<compile_context>
chip_gen: v6e
topology: v6e:2x2x1
jax: 0.10.0
libtpu: 0.0.40
codegen_flags: <defaults>
</compile_context>

<pallas_src>
import functools

import jax
import jax.numpy as jnp
from jax.experimental import pallas as pl
from jax.experimental.pallas import tpu as pltpu

_LANE = 128


def _round_up(x, m):
  return -(-x // m) * m


def _pick_tile_len(L, padding, target):
  """Largest L-tile <= target that divides L, is a multiple of 8 and >= pad."""
  if L <= target:
    return L
  for t in range(min(target, L), 7, -1):
    if L % t == 0 and t % 8 == 0 and t >= max(padding, 8):
      return t
  return L  # fall back to a single tile


def _vmem_limit_bytes():
  # ~3/4 of physical VMEM: ~96 MiB on v5e/v6e (128 MiB), ~48 MiB on v7x (64).
  try:
    cap = int(pltpu.get_tpu_info().vmem_capacity_bytes)
  except Exception:
    cap = 64 * 1024 * 1024
  return int(min((cap * 3) // 4, 96 * 1024 * 1024))


# ---------------------------------------------------------------------------
# Pallas kernel: one (batch, L-tile) step of the TemporalBlock forward.
# Channel dims are padded to a multiple of 128 (lane-dense); all matmul
# operands are bf16, accumulation f32 on the MXU.
# ---------------------------------------------------------------------------
def _temporal_block_kernel(x_ref, w1_ref, b1_ref, w2_ref, b2_ref, wd_ref,
                           bd_ref, o_ref, xpad_ref, hid_ref, *, kernel_size,
                           dilation, padding, pad_align, tile_len,
                           use_downsample):
  K, d, p, p_al, TL = kernel_size, dilation, padding, pad_align, tile_len
  cp_out = o_ref.shape[2]
  lt = pl.program_id(1)            # L-tile index ("arbitrary" axis)

  if p > 0:
    # Causal halo handling: only the p halo rows are touched (no full-scratch
    # zeroing).  At the first L tile of a batch element they are zeros; for
    # later tiles they carry the last p rows of the previous tile.
    @pl.when(lt == 0)
    def _init_halo():
      xpad_ref[p_al - p:p_al, :] = jnp.zeros((p, xpad_ref.shape[1]),
                                             xpad_ref.dtype)
      hid_ref[p_al - p:p_al, :] = jnp.zeros((p, cp_out), hid_ref.dtype)

    @pl.when(lt > 0)
    def _carry_halo():
      tail_x = xpad_ref[p_al + TL - p:p_al + TL, :]
      tail_h = hid_ref[p_al + TL - p:p_al + TL, :]
      xpad_ref[p_al - p:p_al, :] = tail_x
      hid_ref[p_al - p:p_al, :] = tail_h

  # New x tile (already bf16, channel-padded) -> aligned, unmasked store.
  xpad_ref[p_al:p_al + TL, :] = x_ref[0]

  # ---- conv1 (dilated, causal) : bias folded into the accumulator init -----
  acc = jnp.broadcast_to(b1_ref[...], (TL, cp_out))
  for k in range(K):
    acc = acc + jnp.dot(xpad_ref[pl.ds(p_al - p + k * d, TL), :], w1_ref[k],
                        preferred_element_type=jnp.float32)
  h1 = jnp.maximum(acc, 0.0)                                  # (TL, CPout) f32

  # Stage h1 (causally padded via the same halo scheme) for conv2.
  hid_ref[p_al:p_al + TL, :] = h1.astype(hid_ref.dtype)

  # ---- conv2 (dilated, causal) ---------------------------------------------
  acc = jnp.broadcast_to(b2_ref[...], (TL, cp_out))
  for k in range(K):
    acc = acc + jnp.dot(hid_ref[pl.ds(p_al - p + k * d, TL), :], w2_ref[k],
                        preferred_element_type=jnp.float32)
  h2 = jnp.maximum(acc, 0.0)

  # ---- residual branch last (keeps fewer f32 temporaries live) -------------
  if use_downsample:
    res = jnp.dot(xpad_ref[pl.ds(p_al, TL), :], wd_ref[...],
                  preferred_element_type=jnp.float32) + bd_ref[...]
  else:
    res = xpad_ref[pl.ds(p_al, TL), :].astype(jnp.float32)    # identity (bf16)

  # Final ReLU(out + res); lane-dense full-block store (bf16 writeback).
  o_ref[0] = jnp.maximum(h2 + res, 0.0).astype(o_ref.dtype)


# ---------------------------------------------------------------------------
# Wrapper: x prep (NCL->NLC, channel pad, bf16), weight prep, pallas_call.
# ---------------------------------------------------------------------------
def temporal_block(x_ncl, w1, b1, w2, b2, wd, bd, *, kernel_size, dilation,
                   padding, tile_len_target=512):
  """x_ncl: (N, C_in, L).  Channels-last weights: w1 (K, Cin, Cout),
  w2 (K, Cout, Cout), wd (Cin, Cout) or None (identity residual); biases
  (Cout,).  Returns (N, C_out, L) float32."""
  N, C_in, L = x_ncl.shape
  K = kernel_size
  C_out = w1.shape[2]
  d, p = dilation, padding
  # Standard TCN padding required; otherwise in-kernel slices would be OOB.
  if p != (K - 1) * d:
    raise ValueError("padding must equal (kernel_size - 1) * dilation")
  use_downsample = wd is not None
  if not use_downsample and C_in != C_out:
    raise ValueError("identity residual requires n_inputs == n_outputs")

  cp_in = _round_up(C_in, _LANE)
  cp_out = _round_up(C_out, _LANE)
  TL = _pick_tile_len(L, p, tile_len_target)
  num_lt = L // TL
  p_al = _round_up(p, 16) if p > 0 else 0    # bf16 sublane-aligned pad offset

  bf = jnp.bfloat16
  # One-time parameter prep: zero-pad channels to lane-dense widths; bf16
  # matmul operands (f32 accumulation on the MXU), f32 biases.
  w1_p = jnp.zeros((K, cp_in, cp_out), bf).at[:, :C_in, :C_out].set(w1.astype(bf))
  w2_p = jnp.zeros((K, cp_out, cp_out), bf).at[:, :C_out, :C_out].set(w2.astype(bf))
  b1_p = jnp.zeros((1, cp_out), jnp.float32).at[0, :C_out].set(b1.astype(jnp.float32))
  b2_p = jnp.zeros((1, cp_out), jnp.float32).at[0, :C_out].set(b2.astype(jnp.float32))
  if use_downsample:
    wd_p = jnp.zeros((cp_in, cp_out), bf).at[:C_in, :C_out].set(wd.astype(bf))
    bd_p = jnp.zeros((1, cp_out), jnp.float32).at[0, :C_out].set(bd.astype(jnp.float32))
  else:  # dummies, never read by the kernel
    wd_p = jnp.zeros((cp_in, cp_out), bf)
    bd_p = jnp.zeros((1, cp_out), jnp.float32)

  # x prep: NCL -> NLC, bf16, channel pad to cp_in (fuses into one XLA pass),
  # so the per-tile DMA is dense and the in-kernel copy is unmasked.
  x_nlc = jnp.transpose(x_ncl, (0, 2, 1)).astype(bf)
  if cp_in > C_in:
    x_nlc = jnp.pad(x_nlc, ((0, 0), (0, 0), (0, cp_in - C_in)))

  kernel = functools.partial(_temporal_block_kernel, kernel_size=K, dilation=d,
                             padding=p, pad_align=p_al, tile_len=TL,
                             use_downsample=use_downsample)

  out_pad = pl.pallas_call(
      kernel,
      # bf16 output with padded channels: halves writeback; for a stacked TCN
      # keep NLC bf16 end-to-end and drop the wrapper slice/transpose below.
      out_shape=jax.ShapeDtypeStruct((N, L, cp_out), jnp.bfloat16),
      grid_spec=pltpu.PrefetchScalarGridSpec(
          num_scalar_prefetch=0,
          grid=(N, num_lt),
          in_specs=[
              pl.BlockSpec((1, TL, cp_in), lambda n, l: (n, l, 0)),      # x
              pl.BlockSpec((K, cp_in, cp_out), lambda n, l: (0, 0, 0)),  # w1
              pl.BlockSpec((1, cp_out), lambda n, l: (0, 0)),            # b1
              pl.BlockSpec((K, cp_out, cp_out), lambda n, l: (0, 0, 0)), # w2
              pl.BlockSpec((1, cp_out), lambda n, l: (0, 0)),            # b2
              pl.BlockSpec((cp_in, cp_out), lambda n, l: (0, 0)),        # wd
              pl.BlockSpec((1, cp_out), lambda n, l: (0, 0)),            # bd
          ],
          out_specs=pl.BlockSpec((1, TL, cp_out), lambda n, l: (n, l, 0)),
          scratch_shapes=[
              pltpu.VMEM((p_al + TL, cp_in), jnp.bfloat16),   # padded x tile
              pltpu.VMEM((p_al + TL, cp_out), jnp.bfloat16),  # padded h1 tile
          ],
      ),
      compiler_params=pltpu.CompilerParams(
          dimension_semantics=("parallel", "arbitrary"),
          vmem_limit_bytes=_vmem_limit_bytes()),
  )(x_nlc, w1_p, b1_p, w2_p, b2_p, wd_p, bd_p)

  # Strip channel padding, NLC -> NCL, f32 to match the PyTorch interface.
  return jnp.transpose(out_pad[:, :, :C_out], (0, 2, 1)).astype(jnp.float32)


# ---------------------------------------------------------------------------
# Parameter construction (deterministic), weight_norm reparameterization.
# ---------------------------------------------------------------------------
def _weight_norm(v, g):
  # v: (Cout, Cin, K), g: (Cout,).  w = g * v / ||v||  (norm over dims 1,2).
  norm = jnp.sqrt(jnp.sum(v * v, axis=(1, 2), keepdims=True))
  return g.reshape(-1, 1, 1) * v / norm


def make_params(key, n_inputs, n_outputs, kernel_size):
  ks = jax.random.split(key, 6)
  v1 = 0.01 * jax.random.normal(ks[0], (n_outputs, n_inputs, kernel_size),
                                jnp.float32)
  g1 = jnp.sqrt(jnp.sum(v1 * v1, axis=(1, 2)))
  w1_oik = _weight_norm(v1, g1)
  b1 = 0.05 * jax.random.normal(ks[1], (n_outputs,), jnp.float32)

  v2 = 0.01 * jax.random.normal(ks[2], (n_outputs, n_outputs, kernel_size),
                                jnp.float32)
  g2 = jnp.sqrt(jnp.sum(v2 * v2, axis=(1, 2)))
  w2_oik = _weight_norm(v2, g2)
  b2 = 0.05 * jax.random.normal(ks[3], (n_outputs,), jnp.float32)

  if n_inputs != n_outputs:
    wd_oik = 0.01 * jax.random.normal(ks[4], (n_outputs, n_inputs, 1),
                                      jnp.float32)
    bd = 0.05 * jax.random.normal(ks[5], (n_outputs,), jnp.float32)
    wd = jnp.transpose(wd_oik[:, :, 0], (1, 0))          # (Cin, Cout)
  else:
    wd_oik, bd, wd = None, None, None                    # identity residual

  # Channels-last conv weights for the kernel: (K, Cin, Cout).
  w1 = jnp.transpose(w1_oik, (2, 1, 0))
  w2 = jnp.transpose(w2_oik, (2, 1, 0))
  return (w1_oik, w2_oik, wd_oik), (w1, b1, w2, b2, wd, bd)


# ---------------------------------------------------------------------------
# Pure-JAX reference (NCL layout, mirrors the PyTorch graph exactly).
# ---------------------------------------------------------------------------
def reference_temporal_block(x, w1_oik, b1, w2_oik, b2, wd_oik, bd, *,
                             dilation, padding):
  def conv1d(inp, w, b, dil, pad):
    out = jax.lax.conv_general_dilated(
        inp, w, window_strides=(1,), padding=[(pad, pad)],
        rhs_dilation=(dil,), dimension_numbers=("NCH", "OIH", "NCH"),
        precision=jax.lax.Precision.HIGHEST)
    return out + b[None, :, None]

  h = conv1d(x, w1_oik, b1, dilation, padding)
  h = h[:, :, :-padding]                       # Chomp1d
  h = jnp.maximum(h, 0.0)                      # ReLU (dropout = identity)
  h = conv1d(h, w2_oik, b2, dilation, padding)
  h = h[:, :, :-padding]
  h = jnp.maximum(h, 0.0)
  res = x if wd_oik is None else conv1d(x, wd_oik, bd, 1, 0)
  return jnp.maximum(h + res, 0.0)


if __name__ == "__main__":
  key = jax.random.PRNGKey(0)
  k1, k2, k3, k4 = jax.random.split(key, 4)

  # Reference uses the same bf16-rounded matmul operands as the kernel; the
  # comparison tolerance also covers the kernel's bf16 output writeback.
  def _q(a):
    return a.astype(jnp.bfloat16).astype(jnp.float32)

  # --- test 1: downsample residual path (n_inputs != n_outputs), single tile.
  batch, n_inputs, n_outputs, seq_len = 2, 4, 8, 16
  kernel_size, dilation = 3, 2
  padding = (kernel_size - 1) * dilation        # causal TCN padding

  x = jax.random.normal(k1, (batch, n_inputs, seq_len), jnp.float32)
  (w1_oik, w2_oik, wd_oik), (w1, b1, w2, b2, wd, bd) = make_params(
      k2, n_inputs, n_outputs, kernel_size)

  out = temporal_block(x, w1, b1, w2, b2, wd, bd,
                       kernel_size=kernel_size, dilation=dilation,
                       padding=padding)
  out = jax.block_until_ready(out)
  ref = reference_temporal_block(_q(x), _q(w1_oik), b1, _q(w2_oik), b2,
                                 _q(wd_oik), bd,
                                 dilation=dilation, padding=padding)
  assert out.shape == (batch, n_outputs, seq_len)
  assert jnp.allclose(out, ref, rtol=2e-2, atol=5e-3), (
      float(jnp.max(jnp.abs(out - ref))))

  # --- test 2: identity residual (n_inputs == n_outputs) and multi-L-tile
  #             halo carry (L=32 with tile_len_target=16 -> 2 L tiles).
  batch2, n_ch, seq_len2 = 2, 8, 32
  x2 = jax.random.normal(k3, (batch2, n_ch, seq_len2), jnp.float32)
  (w1_oik2, w2_oik2, _), (w1b, b1b, w2b, b2b, _, _) = make_params(
      k4, n_ch, n_ch, kernel_size)
  out2 = temporal_block(x2, w1b, b1b, w2b, b2b, None, None,
                        kernel_size=kernel_size, dilation=dilation,
                        padding=padding, tile_len_target=16)
  out2 = jax.block_until_ready(out2)
  ref2 = reference_temporal_block(_q(x2), _q(w1_oik2), b1b, _q(w2_oik2), b2b,
                                  None, None,
                                  dilation=dilation, padding=padding)
  assert out2.shape == (batch2, n_ch, seq_len2)
  assert jnp.allclose(out2, ref2, rtol=2e-2, atol=1e-2), (
      float(jnp.max(jnp.abs(out2 - ref2))))

  print("KERNEL_OK")
</pallas_src>

<mosaic_0001>
module attributes {stable_mosaic.version = 11 : i64} {
  func.func @_temporal_block_kernel(%arg0: i32, %arg1: i32, %arg2: memref<1x16x128xbf16, #tpu.memory_space<vmem>>, %arg3: memref<3x128x128xbf16, #tpu.memory_space<vmem>>, %arg4: memref<1x128xf32, #tpu.memory_space<vmem>>, %arg5: memref<3x128x128xbf16, #tpu.memory_space<vmem>>, %arg6: memref<1x128xf32, #tpu.memory_space<vmem>>, %arg7: memref<128x128xbf16, #tpu.memory_space<vmem>>, %arg8: memref<1x128xf32, #tpu.memory_space<vmem>>, %arg9: memref<1x16x128xbf16, #tpu.memory_space<vmem>>, %arg10: memref<32x128xbf16, #tpu.memory_space<vmem>>, %arg11: memref<32x128xbf16, #tpu.memory_space<vmem>>) attributes {dimension_semantics = [#tpu.dimension_semantics<parallel>, #tpu.dimension_semantics<arbitrary>], iteration_bounds = array<i64: 2, 1>, scalar_prefetch = 0 : i64, scratch_operands = 2 : i64, tpu.core_type = #tpu.core_type<tc>, window_params = [{transform_indices = @transform_0, window_bounds = array<i64: 1, 16, 128>}, {pipeline_mode = #tpu.pipeline_mode<synchronous>, transform_indices = @transform_1, window_bounds = array<i64: 3, 128, 128>}, {pipeline_mode = #tpu.pipeline_mode<synchronous>, transform_indices = @transform_2, window_bounds = array<i64: 1, 128>}, {pipeline_mode = #tpu.pipeline_mode<synchronous>, transform_indices = @transform_3, window_bounds = array<i64: 3, 128, 128>}, {pipeline_mode = #tpu.pipeline_mode<synchronous>, transform_indices = @transform_4, window_bounds = array<i64: 1, 128>}, {pipeline_mode = #tpu.pipeline_mode<synchronous>, transform_indices = @transform_5, window_bounds = array<i64: 128, 128>}, {pipeline_mode = #tpu.pipeline_mode<synchronous>, transform_indices = @transform_6, window_bounds = array<i64: 1, 128>}, {transform_indices = @transform_7, window_bounds = array<i64: 1, 16, 128>}]} {
    %c0_i32 = arith.constant 0 : i32
    %0 = arith.cmpi eq, %arg1, %c0_i32 : i32
    %1 = arith.extui %0 : i1 to i32
    %c0_i32_0 = arith.constant 0 : i32
    %2 = arith.cmpi ne, %1, %c0_i32_0 : i32
    scf.if %2 {
      %cst_56 = arith.constant 0.000000e+00 : bf16
      %64 = vector.broadcast %cst_56 : bf16 to vector<4x128xbf16>
      %c12_57 = arith.constant 12 : index
      %c0_58 = arith.constant 0 : index
      %65 = vector.load %arg10[%c12_57, %c0_58] : memref<32x128xbf16, #tpu.memory_space<vmem>>, vector<4x128xbf16>
      tpu.vector_store %arg10[%c12_57, %c0_58], %64 {strides = array<i32>} : memref<32x128xbf16, #tpu.memory_space<vmem>>, vector<4x128xbf16>,
      %cst_59 = arith.constant 0.000000e+00 : bf16
      %66 = vector.broadcast %cst_59 : bf16 to vector<4x128xbf16>
      %c12_60 = arith.constant 12 : index
      %c0_61 = arith.constant 0 : index
      %67 = vector.load %arg11[%c12_60, %c0_61] : memref<32x128xbf16, #tpu.memory_space<vmem>>, vector<4x128xbf16>
      tpu.vector_store %arg11[%c12_60, %c0_61], %66 {strides = array<i32>} : memref<32x128xbf16, #tpu.memory_space<vmem>>, vector<4x128xbf16>,
    } else {
    }
    %c0_i32_1 = arith.constant 0 : i32
    %3 = arith.cmpi sgt, %arg1, %c0_i32_1 : i32
    %4 = arith.extui %3 : i1 to i32
    %c0_i32_2 = arith.constant 0 : i32
    %5 = arith.cmpi ne, %4, %c0_i32_2 : i32
    scf.if %5 {
      %c28 = arith.constant 28 : index
      %c0_56 = arith.constant 0 : index
      %64 = vector.load %arg10[%c28, %c0_56] : memref<32x128xbf16, #tpu.memory_space<vmem>>, vector<4x128xbf16>
      %c28_57 = arith.constant 28 : index
      %c0_58 = arith.constant 0 : index
      %65 = vector.load %arg11[%c28_57, %c0_58] : memref<32x128xbf16, #tpu.memory_space<vmem>>, vector<4x128xbf16>
      %c12_59 = arith.constant 12 : index
      %c0_60 = arith.constant 0 : index
      %66 = vector.load %arg10[%c12_59, %c0_60] : memref<32x128xbf16, #tpu.memory_space<vmem>>, vector<4x128xbf16>
      tpu.vector_store %arg10[%c12_59, %c0_60], %64 {strides = array<i32>} : memref<32x128xbf16, #tpu.memory_space<vmem>>, vector<4x128xbf16>,
      %c12_61 = arith.constant 12 : index
      %c0_62 = arith.constant 0 : index
      %67 = vector.load %arg11[%c12_61, %c0_62] : memref<32x128xbf16, #tpu.memory_space<vmem>>, vector<4x128xbf16>
      tpu.vector_store %arg11[%c12_61, %c0_62], %65 {strides = array<i32>} : memref<32x128xbf16, #tpu.memory_space<vmem>>, vector<4x128xbf16>,
    } else {
    }
    %c0 = arith.constant 0 : index
    %c0_3 = arith.constant 0 : index
    %c0_4 = arith.constant 0 : index
    %6 = vector.load %arg2[%c0, %c0_3, %c0_4] : memref<1x16x128xbf16, #tpu.memory_space<vmem>>, vector<1x16x128xbf16>
    %7 = vector.shape_cast %6 : vector<1x16x128xbf16> to vector<16x128xbf16>
    %c16 = arith.constant 16 : index
    %c0_5 = arith.constant 0 : index
    %8 = vector.load %arg10[%c16, %c0_5] : memref<32x128xbf16, #tpu.memory_space<vmem>>, vector<16x128xbf16>
    tpu.vector_store %arg10[%c16, %c0_5], %7 {strides = array<i32>} : memref<32x128xbf16, #tpu.memory_space<vmem>>, vector<16x128xbf16>,
    %c0_6 = arith.constant 0 : index
    %c0_7 = arith.constant 0 : index
    %9 = vector.load %arg4[%c0_6, %c0_7] : memref<1x128xf32, #tpu.memory_space<vmem>>, vector<1x128xf32>
    %10 = vector.shape_cast %9 : vector<1x128xf32> to vector<1x128xf32>
    %11 = vector.broadcast %10 : vector<1x128xf32> to vector<16x128xf32>
    %c12 = arith.constant 12 : index
    %c0_8 = arith.constant 0 : index
    %12 = vector.load %arg10[%c12, %c0_8] : memref<32x128xbf16, #tpu.memory_space<vmem>>, vector<16x128xbf16>
    %c0_9 = arith.constant 0 : index
    %c0_10 = arith.constant 0 : index
    %c0_11 = arith.constant 0 : index
    %13 = vector.load %arg3[%c0_9, %c0_10, %c0_11] : memref<3x128x128xbf16, #tpu.memory_space<vmem>>, vector<1x128x128xbf16>
    %14 = vector.shape_cast %13 : vector<1x128x128xbf16> to vector<128x128xbf16>
    %cst = arith.constant dense<0.000000e+00> : vector<16x128xf32>
    %15 = tpu.matmul %12, %14, %cst {dimension_numbers = #tpu.dot_dimension_numbers<[1], [0], [0], [1], [0, 0, 1, 1], [], []>} : vector<16x128xbf16>, vector<128x128xbf16>, vector<16x128xf32> -> vector<16x128xf32>
    %16 = arith.addf %11, %15 : vector<16x128xf32>
    %c14 = arith.constant 14 : index
    %c0_12 = arith.constant 0 : index
    %17 = vector.load %arg10[%c14, %c0_12] : memref<32x128xbf16, #tpu.memory_space<vmem>>, vector<16x128xbf16>
    %c1 = arith.constant 1 : index
    %c0_13 = arith.constant 0 : index
    %c0_14 = arith.constant 0 : index
    %18 = vector.load %arg3[%c1, %c0_13, %c0_14] : memref<3x128x128xbf16, #tpu.memory_space<vmem>>, vector<1x128x128xbf16>
    %19 = vector.shape_cast %18 : vector<1x128x128xbf16> to vector<128x128xbf16>
    %cst_15 = arith.constant dense<0.000000e+00> : vector<16x128xf32>
    %20 = tpu.matmul %17, %19, %cst_15 {dimension_numbers = #tpu.dot_dimension_numbers<[1], [0], [0], [1], [0, 0, 1, 1], [], []>} : vector<16x128xbf16>, vector<128x128xbf16>, vector<16x128xf32> -> vector<16x128xf32>
    %21 = arith.addf %16, %20 : vector<16x128xf32>
    %c16_16 = arith.constant 16 : index
    %c0_17 = arith.constant 0 : index
    %22 = vector.load %arg10[%c16_16, %c0_17] : memref<32x128xbf16, #tpu.memory_space<vmem>>, vector<16x128xbf16>
    %c2 = arith.constant 2 : index
    %c0_18 = arith.constant 0 : index
    %c0_19 = arith.constant 0 : index
    %23 = vector.load %arg3[%c2, %c0_18, %c0_19] : memref<3x128x128xbf16, #tpu.memory_space<vmem>>, vector<1x128x128xbf16>
    %24 = vector.shape_cast %23 : vector<1x128x128xbf16> to vector<128x128xbf16>
    %cst_20 = arith.constant dense<0.000000e+00> : vector<16x128xf32>
    %25 = tpu.matmul %22, %24, %cst_20 {dimension_numbers = #tpu.dot_dimension_numbers<[1], [0], [0], [1], [0, 0, 1, 1], [], []>} : vector<16x128xbf16>, vector<128x128xbf16>, vector<16x128xf32> -> vector<16x128xf32>
    %26 = arith.addf %21, %25 : vector<16x128xf32>
    %cst_21 = arith.constant 0.000000e+00 : f32
    %27 = vector.broadcast %cst_21 : f32 to vector<16x128xf32>
    %28 = arith.maximumf %26, %27 : vector<16x128xf32>
    %29 = arith.truncf %28 : vector<16x128xf32> to vector<16x128xbf16>
    %c16_22 = arith.constant 16 : index
    %c0_23 = arith.constant 0 : index
    %30 = vector.load %arg11[%c16_22, %c0_23] : memref<32x128xbf16, #tpu.memory_space<vmem>>, vector<16x128xbf16>
    tpu.vector_store %arg11[%c16_22, %c0_23], %29 {strides = array<i32>} : memref<32x128xbf16, #tpu.memory_space<vmem>>, vector<16x128xbf16>,
    %c0_24 = arith.constant 0 : index
    %c0_25 = arith.constant 0 : index
    %31 = vector.load %arg6[%c0_24, %c0_25] : memref<1x128xf32, #tpu.memory_space<vmem>>, vector<1x128xf32>
    %32 = vector.shape_cast %31 : vector<1x128xf32> to vector<1x128xf32>
    %33 = vector.broadcast %32 : vector<1x128xf32> to vector<16x128xf32>
    %c12_26 = arith.constant 12 : index
    %c0_27 = arith.constant 0 : index
    %34 = vector.load %arg11[%c12_26, %c0_27] : memref<32x128xbf16, #tpu.memory_space<vmem>>, vector<16x128xbf16>
    %c0_28 = arith.constant 0 : index
    %c0_29 = arith.constant 0 : index
    %c0_30 = arith.constant 0 : index
    %35 = vector.load %arg5[%c0_28, %c0_29, %c0_30] : memref<3x128x128xbf16, #tpu.memory_space<vmem>>, vector<1x128x128xbf16>
    %36 = vector.shape_cast %35 : vector<1x128x128xbf16> to vector<128x128xbf16>
    %cst_31 = arith.constant dense<0.000000e+00> : vector<16x128xf32>
    %37 = tpu.matmul %34, %36, %cst_31 {dimension_numbers = #tpu.dot_dimension_numbers<[1], [0], [0], [1], [0, 0, 1, 1], [], []>} : vector<16x128xbf16>, vector<128x128xbf16>, vector<16x128xf32> -> vector<16x128xf32>
    %38 = arith.addf %33, %37 : vector<16x128xf32>
    %c14_32 = arith.constant 14 : index
    %c0_33 = arith.constant 0 : index
    %39 = vector.load %arg11[%c14_32, %c0_33] : memref<32x128xbf16, #tpu.memory_space<vmem>>, vector<16x128xbf16>
    %c1_34 = arith.constant 1 : index
    %c0_35 = arith.constant 0 : index
    %c0_36 = arith.constant 0 : index
    %40 = vector.load %arg5[%c1_34, %c0_35, %c0_36] : memref<3x128x128xbf16, #tpu.memory_space<vmem>>, vector<1x128x128xbf16>
    %41 = vector.shape_cast %40 : vector<1x128x128xbf16> to vector<128x128xbf16>
    %cst_37 = arith.constant dense<0.000000e+00> : vector<16x128xf32>
    %42 = tpu.matmul %39, %41, %cst_37 {dimension_numbers = #tpu.dot_dimension_numbers<[1], [0], [0], [1], [0, 0, 1, 1], [], []>} : vector<16x128xbf16>, vector<128x128xbf16>, vector<16x128xf32> -> vector<16x128xf32>
    %43 = arith.addf %38, %42 : vector<16x128xf32>
    %c16_38 = arith.constant 16 : index
    %c0_39 = arith.constant 0 : index
    %44 = vector.load %arg11[%c16_38, %c0_39] : memref<32x128xbf16, #tpu.memory_space<vmem>>, vector<16x128xbf16>
    %c2_40 = arith.constant 2 : index
    %c0_41 = arith.constant 0 : index
    %c0_42 = arith.constant 0 : index
    %45 = vector.load %arg5[%c2_40, %c0_41, %c0_42] : memref<3x128x128xbf16, #tpu.memory_space<vmem>>, vector<1x128x128xbf16>
    %46 = vector.shape_cast %45 : vector<1x128x128xbf16> to vector<128x128xbf16>
    %cst_43 = arith.constant dense<0.000000e+00> : vector<16x128xf32>
    %47 = tpu.matmul %44, %46, %cst_43 {dimension_numbers = #tpu.dot_dimension_numbers<[1], [0], [0], [1], [0, 0, 1, 1], [], []>} : vector<16x128xbf16>, vector<128x128xbf16>, vector<16x128xf32> -> vector<16x128xf32>
    %48 = arith.addf %43, %47 : vector<16x128xf32>
    %cst_44 = arith.constant 0.000000e+00 : f32
    %49 = vector.broadcast %cst_44 : f32 to vector<16x128xf32>
    %50 = arith.maximumf %48, %49 : vector<16x128xf32>
    %c16_45 = arith.constant 16 : index
    %c0_46 = arith.constant 0 : index
    %51 = vector.load %arg10[%c16_45, %c0_46] : memref<32x128xbf16, #tpu.memory_space<vmem>>, vector<16x128xbf16>
    %c0_47 = arith.constant 0 : index
    %c0_48 = arith.constant 0 : index
    %52 = vector.load %arg7[%c0_47, %c0_48] : memref<128x128xbf16, #tpu.memory_space<vmem>>, vector<128x128xbf16>
    %cst_49 = arith.constant dense<0.000000e+00> : vector<16x128xf32>
    %53 = tpu.matmul %51, %52, %cst_49 {dimension_numbers = #tpu.dot_dimension_numbers<[1], [0], [0], [1], [0, 0, 1, 1], [], []>} : vector<16x128xbf16>, vector<128x128xbf16>, vector<16x128xf32> -> vector<16x128xf32>
    %c0_50 = arith.constant 0 : index
    %c0_51 = arith.constant 0 : index
    %54 = vector.load %arg8[%c0_50, %c0_51] : memref<1x128xf32, #tpu.memory_space<vmem>>, vector<1x128xf32>
    %55 = vector.broadcast %54 : vector<1x128xf32> to vector<16x128xf32>
    %56 = arith.addf %53, %55 : vector<16x128xf32>
    %57 = arith.addf %50, %56 : vector<16x128xf32>
    %cst_52 = arith.constant 0.000000e+00 : f32
    %58 = vector.broadcast %cst_52 : f32 to vector<16x128xf32>
    %59 = arith.maximumf %57, %58 : vector<16x128xf32>
    %60 = arith.truncf %59 : vector<16x128xf32> to vector<16x128xbf16>
    %c0_53 = arith.constant 0 : index
    %c0_54 = arith.constant 0 : index
    %c0_55 = arith.constant 0 : index
    %61 = vector.load %arg9[%c0_53, %c0_54, %c0_55] : memref<1x16x128xbf16, #tpu.memory_space<vmem>>, vector<1x16x128xbf16>
    %62 = vector.shape_cast %61 : vector<1x16x128xbf16> to vector<16x128xbf16>
    %63 = vector.shape_cast %60 : vector<16x128xbf16> to vector<1x16x128xbf16>
    tpu.vector_store %arg9[%c0_53, %c0_54, %c0_55], %63 {strides = array<i32>} : memref<1x16x128xbf16, #tpu.memory_space<vmem>>, vector<1x16x128xbf16>,
    return
  }
  func.func @transform_0(%arg0: i32, %arg1: i32) -> (i32, i32, i32) {
    %c0_i32 = arith.constant 0 : i32
    %c0_i32_0 = arith.constant 0 : i32
    return %arg0, %arg1, %c0_i32 : i32, i32, i32
  }
  func.func @transform_1(%arg0: i32, %arg1: i32) -> (i32, i32, i32) {
    %c0_i32 = arith.constant 0 : i32
    %c0_i32_0 = arith.constant 0 : i32
    %c0_i32_1 = arith.constant 0 : i32
    %c0_i32_2 = arith.constant 0 : i32
    return %c0_i32, %c0_i32_0, %c0_i32_1 : i32, i32, i32
  }
  func.func @transform_2(%arg0: i32, %arg1: i32) -> (i32, i32) {
    %c0_i32 = arith.constant 0 : i32
    %c0_i32_0 = arith.constant 0 : i32
    %c0_i32_1 = arith.constant 0 : i32
    return %c0_i32, %c0_i32_0 : i32, i32
  }
  func.func @transform_3(%arg0: i32, %arg1: i32) -> (i32, i32, i32) {
    %c0_i32 = arith.constant 0 : i32
    %c0_i32_0 = arith.constant 0 : i32
    %c0_i32_1 = arith.constant 0 : i32
    %c0_i32_2 = arith.constant 0 : i32
    return %c0_i32, %c0_i32_0, %c0_i32_1 : i32, i32, i32
  }
  func.func @transform_4(%arg0: i32, %arg1: i32) -> (i32, i32) {
    %c0_i32 = arith.constant 0 : i32
    %c0_i32_0 = arith.constant 0 : i32
    %c0_i32_1 = arith.constant 0 : i32
    return %c0_i32, %c0_i32_0 : i32, i32
  }
  func.func @transform_5(%arg0: i32, %arg1: i32) -> (i32, i32) {
    %c0_i32 = arith.constant 0 : i32
    %c0_i32_0 = arith.constant 0 : i32
    %c0_i32_1 = arith.constant 0 : i32
    return %c0_i32, %c0_i32_0 : i32, i32
  }
  func.func @transform_6(%arg0: i32, %arg1: i32) -> (i32, i32) {
    %c0_i32 = arith.constant 0 : i32
    %c0_i32_0 = arith.constant 0 : i32
    %c0_i32_1 = arith.constant 0 : i32
    return %c0_i32, %c0_i32_0 : i32, i32
  }
  func.func @transform_7(%arg0: i32, %arg1: i32) -> (i32, i32, i32) {
    %c0_i32 = arith.constant 0 : i32
    %c0_i32_0 = arith.constant 0 : i32
    return %arg0, %arg1, %c0_i32 : i32, i32, i32
  }
}

</mosaic_0001>

<llo_original>
// kernel: tpu_custom_call.1
$region0: #{tpu_custom_call.1}
  #allocation0 [shape = 'u32[]', space=smem, size = 0x4, offset = 0x4, fixed_abs, tag = 'smem constant byte address 0x4 - core index']
  #allocation1 [shape = 'u32[144,128]{1,0:T(1,128)}', space=vmem, size = 0x12000, scoped, tag = 'internal scratch']
  #allocation2 [shape = 'bf16[32,128]{1,0:T(8,128)(2,1)}', space=vmem, size = 0x2000, scoped, tag = 'scratch operand']
  #allocation3 [shape = 'bf16[32,128]{1,0:T(8,128)(2,1)}', space=vmem, size = 0x2000, scoped, tag = 'scratch operand']
  %s0 = inlined_call_operand.hbm [shape: bf16[2,16,128], index: 0, kind: input, shape index: {}]
  %s1 = inlined_call_operand.hbm [shape: bf16[3,128,128], index: 1, kind: input, shape index: {}]
  %s2 = inlined_call_operand.vmem [shape: f32[1,128], index: 2, kind: input, shape index: {}]
  %s3 = inlined_call_operand.hbm [shape: bf16[3,128,128], index: 3, kind: input, shape index: {}]
  %s4 = inlined_call_operand.vmem [shape: f32[1,128], index: 4, kind: input, shape index: {}]
  %s5 = inlined_call_operand.hbm [shape: bf16[128,128], index: 5, kind: input, shape index: {}]
  %s6 = inlined_call_operand.vmem [shape: f32[1,128], index: 6, kind: input, shape index: {}]
  %s7 = inlined_call_operand.hbm [shape: bf16[2,16,128], index: 7, kind: output, shape index: {}]
  %s8 = sld [smem:[#allocation0]]
  $region85: #{tpu_custom_call.1} parent=0
    _
  %s10 = ssub.s32 1, %s8
  %s11 = scalar_select 0, %s10, %s8
  $region1: #{tpu_custom_call.1} parent=0
    #allocation4 [shape = 'u8[8192]{0}', space=vmem, size = 0x2000, scoped, tag = 'input window, operand 0']
    #allocation5 [shape = 's32[2]{0}', space=sflag, size = 0x8, scoped, tag = 'scoped memory for tpu_custom_call.1']
    #allocation6 [shape = 's32[2]{0}', space=sflag, size = 0x8, scoped, tag = 'scoped memory for tpu_custom_call.1']
    #allocation7 [shape = 'u8[98304]{0}', space=vmem, size = 0x18000, scoped, tag = 'input window, operand 1, single buffered']
    #allocation8 [shape = 's32[1]{0}', space=sflag, size = 0x4, scoped, tag = 'scoped memory for tpu_custom_call.1']
    #allocation9 [shape = 'u8[98304]{0}', space=vmem, size = 0x18000, scoped, tag = 'input window, operand 3, single buffered']
    #allocation10 [shape = 'u8[32768]{0}', space=vmem, size = 0x8000, scoped, tag = 'input window, operand 5, single buffered']
    #allocation11 [shape = 's32[1]{0}', space=sflag, size = 0x4, scoped, tag = 'scoped memory for tpu_custom_call.1']
    #allocation12 [shape = 'u8[8192]{0}', space=vmem, size = 0x2000, scoped, tag = 'output window, operand 0']
    %12 = vsyncpa [#allocation5], 0
    %s13 = scalar_lea.sflag [#allocation5], 1
    %14 = vsyncpa %s13, 0
    %15 = vsyncpa [#allocation8], 0
    %16 = vsyncpa [#allocation11], 0
    %17 = vsyncpa [#allocation6], 0
    %s18 = scalar_lea.sflag [#allocation6], 1
    %19 = vsyncpa %s18, 0
    loop: start=0, step=1, limit=4
    $region2: #{tpu_custom_call.1} parent=1 // loop_pre_header
      _
    $region3: #{tpu_custom_call.1} parent=1 // loop_header
      %s21 = sphi 0, %s25
      %p22 = scmp.ge.s32.totalorder %s21, 4
      %s28 = sphi 0, %s40
      %s29 = sphi 0, %s36
      %s30 = sphi 0, %s28
      %s31 = sphi 0, %s29
      %s32 = sphi 0, %s30
      %s33 = sphi 0, %s31
      %s45 = sphi 0, %s47
      %s48 = sphi 0, %s45
      %s49 = sphi 0, %s48
      %s65 = sphi 0, %s49
      %s69 = sphi 0, %s69
      %s71 = sphi 0, %s69
      %s72 = sphi 0, %s71
      %s86 = sphi 0, %s72
      %s90 = sphi 0, %s90
      %s92 = sphi 0, %s90
      %s93 = sphi 0, %s92
      %s107 = sphi 0, %s93
      %s111 = sphi 0, %s111
      %s113 = sphi 0, %s111
      %s114 = sphi 0, %s113
      %s128 = sphi 0, %s114
      %s132 = sphi 0, %s132
      %s134 = sphi 0, %s132
      %s135 = sphi 0, %s134
      %s149 = sphi 0, %s135
      %s153 = sphi 0, %s153
      %s155 = sphi 0, %s153
      %s156 = sphi 0, %s155
      %s170 = sphi 0, %s156
      %s174 = sphi 0, %s174
      %s176 = sphi 0, %s174
      %s177 = sphi 0, %s176
      %s191 = sphi 0, %s177
      %s199 = sphi 0, %s201
      %s202 = sphi 0, %s199
      %s203 = sphi 0, %s202
      %s219 = sphi 0, %s203
    $region4: #{tpu_custom_call.1} parent=1 // loop_header_branch
      %24 = sbr.rel (%p22) target = $region8
    $region5: #{tpu_custom_call.1} parent=1 // loop_body
      %s26 = ssub.s32 %s21, 1
      %s27 = ssub.s32 %s21, 2
      %s34 = sadd.s32 1, %s29
      %p35 = scmp.ge.s32.totalorder %s34, 1
      %s36 = scalar_select %p35, 0, %s34
      %s37 = sadd.s32 1, %s28
      %s38 = scalar_select %p35, %s37, %s28
      %p39 = scmp.ge.s32.totalorder %s38, 2
      %s40 = scalar_select %p39, 0, %s38
      %s41 = ssub.s32 %s28, %s40
      %s42 = ssub.s32 %s29, %s36
      %s43 = sor.u32 %s41, %s42
      %p44 = scmp.eq.s32.totalorder %s43, 0
      %s46 = sadd.s32 %s45, 1
      %s47 = scalar_select %p44, %s45, %s46
      %p50 = pneg %p44
      %p51 = scmp.eq.s32.totalorder %s21, 1
      %p52 = por %p50, %p51
      %p53 = scmp.ne.s32.totalorder %s45, %s48
      %p54 = scmp.eq.s32.totalorder %s21, 0
      %p55 = por %p53, %p54
      %p56 = scmp.ne.s32.totalorder %s45, %s48
      %p57 = scmp.eq.s32.totalorder %s26, 1
      %p58 = por %p56, %p57
      %p59 = scmp.ne.s32.totalorder %s48, %s49
      %p60 = scmp.eq.s32.totalorder %s26, 0
      %p61 = por %p59, %p60
      %p62 = scmp.ne.s32.totalorder %s48, %s49
      %p63 = scmp.eq.s32.totalorder %s27, 1
      %p64 = por %p62, %p63
      %p66 = scmp.ne.s32.totalorder %s49, %s65
      %p67 = scmp.eq.s32.totalorder %s27, 0
      %p68 = por %p66, %p67
      %s70 = sadd.s32 %s69, 1
      %p73 = scmp.eq.s32.totalorder %s21, 1
      %p74 = scmp.ne.s32.totalorder %s69, %s71
      %p75 = scmp.eq.s32.totalorder %s21, 0
      %p76 = por %p74, %p75
      %p77 = scmp.ne.s32.totalorder %s69, %s71
      %p78 = scmp.eq.s32.totalorder %s26, 1
      %p79 = por %p77, %p78
      %p80 = scmp.ne.s32.totalorder %s71, %s72
      %p81 = scmp.eq.s32.totalorder %s26, 0
      %p82 = por %p80, %p81
      %p83 = scmp.ne.s32.totalorder %s71, %s72
      %p84 = scmp.eq.s32.totalorder %s27, 1
      %p85 = por %p83, %p84
      %p87 = scmp.ne.s32.totalorder %s72, %s86
      %p88 = scmp.eq.s32.totalorder %s27, 0
      %p89 = por %p87, %p88
      %s91 = sadd.s32 %s90, 1
      %p94 = scmp.eq.s32.totalorder %s21, 1
      %p95 = scmp.ne.s32.totalorder %s90, %s92
      %p96 = scmp.eq.s32.totalorder %s21, 0
      %p97 = por %p95, %p96
      %p98 = scmp.ne.s32.totalorder %s90, %s92
      %p99 = scmp.eq.s32.totalorder %s26, 1
      %p100 = por %p98, %p99
      %p101 = scmp.ne.s32.totalorder %s92, %s93
      %p102 = scmp.eq.s32.totalorder %s26, 0
      %p103 = por %p101, %p102
      %p104 = scmp.ne.s32.totalorder %s92, %s93
      %p105 = scmp.eq.s32.totalorder %s27, 1
      %p106 = por %p104, %p105
      %p108 = scmp.ne.s32.totalorder %s93, %s107
      %p109 = scmp.eq.s32.totalorder %s27, 0
      %p110 = por %p108, %p109
      %s112 = sadd.s32 %s111, 1
      %p115 = scmp.eq.s32.totalorder %s21, 1
      %p116 = scmp.ne.s32.totalorder %s111, %s113
      %p117 = scmp.eq.s32.totalorder %s21, 0
      %p118 = por %p116, %p117
      %p119 = scmp.ne.s32.totalorder %s111, %s113
      %p120 = scmp.eq.s32.totalorder %s26, 1
      %p121 = por %p119, %p120
      %p122 = scmp.ne.s32.totalorder %s113, %s114
      %p123 = scmp.eq.s32.totalorder %s26, 0
      %p124 = por %p122, %p123
      %p125 = scmp.ne.s32.totalorder %s113, %s114
      %p126 = scmp.eq.s32.totalorder %s27, 1
      %p127 = por %p125, %p126
      %p129 = scmp.ne.s32.totalorder %s114, %s128
      %p130 = scmp.eq.s32.totalorder %s27, 0
      %p131 = por %p129, %p130
      %s133 = sadd.s32 %s132, 1
      %p136 = scmp.eq.s32.totalorder %s21, 1
      %p137 = scmp.ne.s32.totalorder %s132, %s134
      %p138 = scmp.eq.s32.totalorder %s21, 0
      %p139 = por %p137, %p138
      %p140 = scmp.ne.s32.totalorder %s132, %s134
      %p141 = scmp.eq.s32.totalorder %s26, 1
      %p142 = por %p140, %p141
      %p143 = scmp.ne.s32.totalorder %s134, %s135
      %p144 = scmp.eq.s32.totalorder %s26, 0
      %p145 = por %p143, %p144
      %p146 = scmp.ne.s32.totalorder %s134, %s135
      %p147 = scmp.eq.s32.totalorder %s27, 1
      %p148 = por %p146, %p147
      %p150 = scmp.ne.s32.totalorder %s135, %s149
      %p151 = scmp.eq.s32.totalorder %s27, 0
      %p152 = por %p150, %p151
      %s154 = sadd.s32 %s153, 1
      %p157 = scmp.eq.s32.totalorder %s21, 1
      %p158 = scmp.ne.s32.totalorder %s153, %s155
      %p159 = scmp.eq.s32.totalorder %s21, 0
      %p160 = por %p158, %p159
      %p161 = scmp.ne.s32.totalorder %s153, %s155
      %p162 = scmp.eq.s32.totalorder %s26, 1
      %p163 = por %p161, %p162
      %p164 = scmp.ne.s32.totalorder %s155, %s156
      %p165 = scmp.eq.s32.totalorder %s26, 0
      %p166 = por %p164, %p165
      %p167 = scmp.ne.s32.totalorder %s155, %s156
      %p168 = scmp.eq.s32.totalorder %s27, 1
      %p169 = por %p167, %p168
      %p171 = scmp.ne.s32.totalorder %s156, %s170
      %p172 = scmp.eq.s32.totalorder %s27, 0
      %p173 = por %p171, %p172
      %s175 = sadd.s32 %s174, 1
      %p178 = scmp.eq.s32.totalorder %s21, 1
      %p179 = scmp.ne.s32.totalorder %s174, %s176
      %p180 = scmp.eq.s32.totalorder %s21, 0
      %p181 = por %p179, %p180
      %p182 = scmp.ne.s32.totalorder %s174, %s176
      %p183 = scmp.eq.s32.totalorder %s26, 1
      %p184 = por %p182, %p183
      %p185 = scmp.ne.s32.totalorder %s176, %s177
      %p186 = scmp.eq.s32.totalorder %s26, 0
      %p187 = por %p185, %p186
      %p188 = scmp.ne.s32.totalorder %s176, %s177
      %p189 = scmp.eq.s32.totalorder %s27, 1
      %p190 = por %p188, %p189
      %p192 = scmp.ne.s32.totalorder %s177, %s191
      %p193 = scmp.eq.s32.totalorder %s27, 0
      %p194 = por %p192, %p193
      %s195 = ssub.s32 %s28, %s40
      %s196 = ssub.s32 %s29, %s36
      %s197 = sor.u32 %s195, %s196
      %p198 = scmp.eq.s32.totalorder %s197, 0
      %s200 = sadd.s32 %s199, 1
      %s201 = scalar_select %p198, %s199, %s200
      %p204 = pneg %p198
      %p205 = scmp.eq.s32.totalorder %s21, 1
      %p206 = por %p204, %p205
      %p207 = scmp.ne.s32.totalorder %s199, %s202
      %p208 = scmp.eq.s32.totalorder %s21, 0
      %p209 = por %p207, %p208
      %p210 = scmp.ne.s32.totalorder %s199, %s202
      %p211 = scmp.eq.s32.totalorder %s26, 1
      %p212 = por %p210, %p211
      %p213 = scmp.ne.s32.totalorder %s202, %s203
      %p214 = scmp.eq.s32.totalorder %s26, 0
      %p215 = por %p213, %p214
      %p216 = scmp.ne.s32.totalorder %s202, %s203
      %p217 = scmp.eq.s32.totalorder %s27, 1
      %p218 = por %p216, %p217
      %p220 = scmp.ne.s32.totalorder %s203, %s219
      %p221 = scmp.eq.s32.totalorder %s27, 0
      %p222 = por %p220, %p221
      %p223 = scmp.le.s32.totalorder 1, %s21
      %p224 = scmp.lt.s32.totalorder %s21, 3
      %p225 = pnand %p223, %p224
      %p226 = pneg %p225
      // Predicated region
      $region9: #{tpu_custom_call.1} parent=5 // pred_check
        _
      $region10: #{tpu_custom_call.1} parent=5 // pred_check_branch
        %228 = sbr.rel (%p225) target = $region12
      $region11: #{tpu_custom_call.1} parent=5 // pred_region
        %s229 = ssub.s32 %s21, 1
        // Predicated region
        $region13: #{tpu_custom_call.1} parent=11 // pred_check
          %p230 = pneg %p82
        $region14: #{tpu_custom_call.1} parent=11 // pred_check_branch
          %232 = sbr.rel (%p230) target = $region16
        $region15: #{tpu_custom_call.1} parent=11 // pred_region
          %s234 = ssub.s32 3072, 3072
          %235 = vsyncadd [#allocation8], %s234
          %s236 = sshll.u32 [#allocation7], 4
          %s237 = int_to_ptr.vmem [resolvable:$true] %s236
          %242 = dma.hbm_to_vmem [thread:$0]  %s1, 3072, %s237, [#allocation8], 64, 64, 4
        $region16: #{tpu_custom_call.1} parent=11 // pred_fallthru
          _
        // Predicated region
        $region17: #{tpu_custom_call.1} parent=11 // pred_check
          %p243 = pneg %p103
        $region18: #{tpu_custom_call.1} parent=11 // pred_check_branch
          %245 = sbr.rel (%p243) target = $region20
        $region19: #{tpu_custom_call.1} parent=11 // pred_region
          _
        $region20: #{tpu_custom_call.1} parent=11 // pred_fallthru
          _
        // Predicated region
        $region21: #{tpu_custom_call.1} parent=11 // pred_check
          %p246 = pneg %p124
        $region22: #{tpu_custom_call.1} parent=11 // pred_check_branch
          %248 = sbr.rel (%p246) target = $region24
        $region23: #{tpu_custom_call.1} parent=11 // pred_region
          %s250 = ssub.s32 3072, 3072
          %251 = vsyncadd [#allocation8], %s250
          %s252 = sshll.u32 [#allocation9], 4
          %s253 = int_to_ptr.vmem [resolvable:$true] %s252
          %258 = dma.hbm_to_vmem [thread:$0]  %s3, 3072, %s253, [#allocation8], 64, 64, 4
        $region24: #{tpu_custom_call.1} parent=11 // pred_fallthru
          _
        // Predicated region
        $region25: #{tpu_custom_call.1} parent=11 // pred_check
          %p259 = pneg %p145
        $region26: #{tpu_custom_call.1} parent=11 // pred_check_branch
          %261 = sbr.rel (%p259) target = $region28
        $region27: #{tpu_custom_call.1} parent=11 // pred_region
          _
        $region28: #{tpu_custom_call.1} parent=11 // pred_fallthru
          _
        // Predicated region
        $region29: #{tpu_custom_call.1} parent=11 // pred_check
          %p262 = pneg %p166
        $region30: #{tpu_custom_call.1} parent=11 // pred_check_branch
          %264 = sbr.rel (%p262) target = $region32
        $region31: #{tpu_custom_call.1} parent=11 // pred_region
          %s266 = ssub.s32 1024, 1024
          %267 = vsyncadd [#allocation11], %s266
          %s268 = sshll.u32 [#allocation10], 4
          %s269 = int_to_ptr.vmem [resolvable:$true] %s268
          %274 = dma.hbm_to_vmem [thread:$0]  %s5, 1024, %s269, [#allocation11], 64, 64, 4
        $region32: #{tpu_custom_call.1} parent=11 // pred_fallthru
          _
        // Predicated region
        $region33: #{tpu_custom_call.1} parent=11 // pred_check
          %p275 = pneg %p187
        $region34: #{tpu_custom_call.1} parent=11 // pred_check_branch
          %277 = sbr.rel (%p275) target = $region36
        $region35: #{tpu_custom_call.1} parent=11 // pred_region
          _
        $region36: #{tpu_custom_call.1} parent=11 // pred_fallthru
          _
      $region12: #{tpu_custom_call.1} parent=5 // pred_fallthru
        _
      %p278 = scmp.lt.s32.totalorder %s21, 2
      // Predicated region
      $region37: #{tpu_custom_call.1} parent=5 // pred_check
        %p279 = pneg %p278
      $region38: #{tpu_custom_call.1} parent=5 // pred_check_branch
        %281 = sbr.rel (%p279) target = $region40
      $region39: #{tpu_custom_call.1} parent=5 // pred_region
        // Predicated region
        $region41: #{tpu_custom_call.1} parent=39 // pred_check
          %p282 = pneg %p55
        $region42: #{tpu_custom_call.1} parent=39 // pred_check_branch
          %284 = sbr.rel (%p282) target = $region44
        $region43: #{tpu_custom_call.1} parent=39 // pred_region
          %s285 = sand.u32 %s45, 1
          %s286 = scalar_lea.sflag [#allocation5], %s285
          %s287 = sand.u32 %s45, 1
          %s288 = smul.addr %s287, 8
          %s289 = scalar_lea.vmem [#allocation4], %s288
          %s290 = smul.u32 2, %s29
          %s292 = ssub.s32 128, 128
          %293 = vsyncadd %s286, %s292
          %s294 = smul.addr %s28, 2
          %s295 = sadd.s32 %s290, %s294
          %s296 = smul.addr %s295, 64
          %s297 = scalar_lea.hbm %s0, %s296
          %s298 = sshll.u32 %s289, 4
          %s299 = int_to_ptr.vmem [resolvable:$true] %s298
          %304 = dma.hbm_to_vmem [thread:$0]  %s297, 128, %s299, %s286, 64, 64, 4
        $region44: #{tpu_custom_call.1} parent=39 // pred_fallthru
          _
      $region40: #{tpu_custom_call.1} parent=5 // pred_fallthru
        _
      %p305 = scmp.le.s32.totalorder 1, %s21
      %p306 = scmp.lt.s32.totalorder %s21, 3
      %p307 = pnand %p305, %p306
      %p308 = pneg %p307
      // Predicated region
      $region45: #{tpu_custom_call.1} parent=5 // pred_check
        _
      $region46: #{tpu_custom_call.1} parent=5 // pred_check_branch
        %310 = sbr.rel (%p307) target = $region48
      $region47: #{tpu_custom_call.1} parent=5 // pred_region
        %s311 = ssub.s32 %s21, 1
        %s312 = sand.u32 %s48, 1
        %s313 = scalar_lea.sflag [#allocation5], %s312
        %s314 = sand.u32 %s48, 1
        %s315 = smul.addr %s314, 8
        %s316 = scalar_lea.vmem [#allocation4], %s315
        // Predicated region
        $region49: #{tpu_custom_call.1} parent=47 // pred_check
          %p317 = pneg %p61
        $region50: #{tpu_custom_call.1} parent=47 // pred_check_branch
          %319 = sbr.rel (%p317) target = $region52
        $region51: #{tpu_custom_call.1} parent=47 // pred_region
          %320 = dma.done %s313, 128
        $region52: #{tpu_custom_call.1} parent=47 // pred_fallthru
          _
        // Predicated region
        $region53: #{tpu_custom_call.1} parent=47 // pred_check
          %p321 = pneg %p82
        $region54: #{tpu_custom_call.1} parent=47 // pred_check_branch
          %323 = sbr.rel (%p321) target = $region56
        $region55: #{tpu_custom_call.1} parent=47 // pred_region
          %324 = dma.done [#allocation8], 3072
        $region56: #{tpu_custom_call.1} parent=47 // pred_fallthru
          _
        // Predicated region
        $region57: #{tpu_custom_call.1} parent=47 // pred_check
          %p325 = pneg %p124
        $region58: #{tpu_custom_call.1} parent=47 // pred_check_branch
          %327 = sbr.rel (%p325) target = $region60
        $region59: #{tpu_custom_call.1} parent=47 // pred_region
          %328 = dma.done [#allocation8], 3072
        $region60: #{tpu_custom_call.1} parent=47 // pred_fallthru
          _
        // Predicated region
        $region61: #{tpu_custom_call.1} parent=47 // pred_check
          %p329 = pneg %p166
        $region62: #{tpu_custom_call.1} parent=47 // pred_check_branch
          %331 = sbr.rel (%p329) target = $region64
        $region63: #{tpu_custom_call.1} parent=47 // pred_region
          %332 = dma.done [#allocation11], 1024
        $region64: #{tpu_custom_call.1} parent=47 // pred_fallthru
          _
        %s333 = sand.u32 %s48, 1
        %s334 = scalar_lea.sflag [#allocation5], %s333
        %s335 = sand.u32 %s48, 1
        %s336 = smul.addr %s335, 8
        %s337 = scalar_lea.vmem [#allocation4], %s336
        %p338 = pneg %p61
        %p339 = pneg %p58
        %p340 = pneg %p82
        %p341 = pneg %p79
        %p342 = pneg %p103
        %p343 = pneg %p100
        %p344 = pneg %p124
        %p345 = pneg %p121
        %p346 = pneg %p145
        %p347 = pneg %p142
        %p348 = pneg %p166
        %p349 = pneg %p163
        %p350 = pneg %p187
        %p351 = pneg %p184
        %p352 = pneg %p215
        %p353 = pneg %p212
        %s354 = sand.u32 %s202, 1
        %s355 = scalar_lea.sflag [#allocation6], %s354
        %s356 = sand.u32 %s202, 1
        %s357 = smul.addr %s356, 8
        %s358 = scalar_lea.vmem [#allocation12], %s357
        %s359 = smul.u32 2, %s31
        %s360 = smul.u32 2, %s31
        %p362 = scmp.eq.s32.totalorder %s31, 0
        // Predicated region
        $region65: #{tpu_custom_call.1} parent=47 // pred_check
          %p363 = pneg %p362
        $region66: #{tpu_custom_call.1} parent=47 // pred_check_branch
          %365 = sbr.rel (%p363) target = $region68
        $region67: #{tpu_custom_call.1} parent=47 // pred_region
          %366 = vst [vmem:[#allocation2 + $0x4] sm:$0xc] 0
          %367 = vst [vmem:[#allocation3 + $0x4] sm:$0xc] 0
        $region68: #{tpu_custom_call.1} parent=47 // pred_fallthru
          _
        %p368 = scmp.gt.s32.totalorder %s31, 0
        // Predicated region
        $region69: #{tpu_custom_call.1} parent=47 // pred_check
          %p369 = pneg %p368
        $region70: #{tpu_custom_call.1} parent=47 // pred_check_branch
          %371 = sbr.rel (%p369) target = $region72
        $region71: #{tpu_custom_call.1} parent=47 // pred_region
          %v372 = vld [vmem:[#allocation2 + $0xc] sm:$0xc]
          %v373 = vld [vmem:[#allocation3 + $0xc] sm:$0xc]
          %374 = vst [vmem:[#allocation2 + $0x4] sm:$0xc] %v372
          %375 = vst [vmem:[#allocation3 + $0x4] sm:$0xc] %v373
        $region72: #{tpu_custom_call.1} parent=47 // pred_fallthru
          _
        %v376 = vld [vmem:[%s316] sm:$0xf]
        %v377 = vld [vmem:[%s316 + $0x4] sm:$0xf]
        %378 = vst [vmem:[#allocation2 + $0x8] sm:$0xf] %v376
        %379 = vst [vmem:[#allocation2 + $0xc] sm:$0xf] %v377
        %v380 = vld [vmem:[%s2] sm:$0x1]
        %v382 = vlaneseq
        %v383 = vshrl.u32 %v382, 7
        %v384 = vsub.s32 0, %v383
        %v385 = vrot.slane %v380, %v384
        %v387 = vld [vmem:[#allocation2 + $0x4] sm:$0xc]
        %v388 = vld [vmem:[#allocation2 + $0x8] sm:$0xf]
        %v389 = vld [vmem:[#allocation2 + $0xc] sm:$0x3]
        %v390 = vld [vmem:[#allocation7] sm:$0xf]
        %v391 = vld [vmem:[#allocation7 + $0x4] sm:$0xf]
        %v392 = vld [vmem:[#allocation7 + $0x8] sm:$0xf]
        %v393 = vld [vmem:[#allocation7 + $0xc] sm:$0xf]
        %v394 = vld [vmem:[#allocation7 + $0x10] sm:$0xf]
        %v395 = vld [vmem:[#allocation7 + $0x14] sm:$0xf]
        %v396 = vld [vmem:[#allocation7 + $0x18] sm:$0xf]
        %v397 = vld [vmem:[#allocation7 + $0x1c] sm:$0xf]
        %v398 = vld [vmem:[#allocation7 + $0x20] sm:$0xf]
        %v399 = vld [vmem:[#allocation7 + $0x24] sm:$0xf]
        %v400 = vld [vmem:[#allocation7 + $0x28] sm:$0xf]
        %v401 = vld [vmem:[#allocation7 + $0x2c] sm:$0xf]
        %v402 = vld [vmem:[#allocation7 + $0x30] sm:$0xf]
        %v403 = vld [vmem:[#allocation7 + $0x34] sm:$0xf]
        %v404 = vld [vmem:[#allocation7 + $0x38] sm:$0xf]
        %v405 = vld [vmem:[#allocation7 + $0x3c] sm:$0xf]
        %v409 = vunpack.c.l.b16 %v387
        %v410 = vunpack.c.l.b16 %v388
        %v411 = vunpack.c.l.b16 %v389
        %v412 = vpack.c.b16 %v410, %v409
        %v413 = vpack.c.b16 %v411, %v411
        %vm414 = vcmask 1045504
        %v415 = vrot.slane %v412, 2
        %v416 = vrot.slane %v413, 2
        %v417 = vsel %vm414, %v415, %v416
        %v435 = vunpack.c.l.b16 %v390
        %v436 = vunpack.c.l.b16 %v391
        %v437 = vunpack.c.l.b16 %v392
        %v438 = vunpack.c.l.b16 %v393
        %v439 = vunpack.c.l.b16 %v394
        %v440 = vunpack.c.l.b16 %v395
        %v441 = vunpack.c.l.b16 %v396
        %v442 = vunpack.c.l.b16 %v397
        %v443 = vunpack.c.l.b16 %v398
        %v444 = vunpack.c.l.b16 %v399
        %v445 = vunpack.c.l.b16 %v400
        %v446 = vunpack.c.l.b16 %v401
        %v447 = vunpack.c.l.b16 %v402
        %v448 = vunpack.c.l.b16 %v403
        %v449 = vunpack.c.l.b16 %v404
        %v450 = vunpack.c.l.b16 %v405
        %v451 = vpack.c.b16 %v436, %v435
        %v452 = vpack.c.b16 %v438, %v437
        %v453 = vpack.c.b16 %v440, %v439
        %v454 = vpack.c.b16 %v442, %v441
        %v455 = vpack.c.b16 %v444, %v443
        %v456 = vpack.c.b16 %v446, %v445
        %v457 = vpack.c.b16 %v448, %v447
        %v458 = vpack.c.b16 %v450, %v449
        %467 = vmatprep.subr.bf16.mxu0 0
        %468 = vmatpush1.bf16.msra.mxu0 %v458
        %469 = vmatprep.subr.bf16.mxu0 0
        %470 = vmatpush1.bf16.msra.mxu0 %v457
        %471 = vmatprep.subr.bf16.mxu0 0
        %472 = vmatpush1.bf16.msra.mxu0 %v456
        %473 = vmatprep.subr.bf16.mxu0 0
        %474 = vmatpush1.bf16.msra.mxu0 %v455
        %475 = vmatprep.subr.bf16.mxu0 0
        %476 = vmatpush1.bf16.msra.mxu0 %v454
        %477 = vmatprep.subr.bf16.mxu0 0
        %478 = vmatpush1.bf16.msra.mxu0 %v453
        %479 = vmatprep.subr.bf16.mxu0 0
        %480 = vmatpush1.bf16.msra.mxu0 %v452
        %481 = vmatprep.subr.bf16.mxu0 0
        %482 = vmatpush1.bf16.msra.mxu0 %v451
        %483 = vmatprep.subr.bf16.mxu0 0
        %484 = vmatpush2.bf16.msra.mxu0 0
        %485 = vmatprep.subr.bf16.mxu0 0
        %486 = vmatpush2.bf16.msra.mxu0 0
        %487 = vmatprep.subr.bf16.mxu0 0
        %488 = vmatpush2.bf16.msra.mxu0 0
        %489 = vmatprep.subr.bf16.mxu0 0
        %490 = vmatpush2.bf16.msra.mxu0 0
        %491 = vmatprep.subr.bf16.mxu0 0
        %492 = vmatpush2.bf16.msra.mxu0 0
        %493 = vmatprep.subr.bf16.mxu0 0
        %494 = vmatpush2.bf16.msra.mxu0 0
        %495 = vmatprep.subr.bf16.mxu0 0
        %496 = vmatpush2.bf16.msra.mxu0 0
        %497 = vmatprep.subr.bf16.mxu0 0
        %498 = vmatpush2.bf16.msra.mxu0 0
        %499 = vmatprep.mubr.bf16.mxu0 0
        %500 = vmatmul.mubr.bf16.gmra.mxu0 %v417
        %v501 = vpop.f32.mrf.mxu0
        %v502 = vadd.f32 0.0, %v501
        %v503 = vpop.f32.mrf.mxu0
        %v504 = vpop.f32.mrf.mxu0
        %v505 = vadd.f32 0.0, %v504
        %v506 = vpop.f32.mrf.mxu0
        %507 = vdwg.mxu0
        %v508 = vadd.f32 %v385, %v502
        %v509 = vadd.f32 %v385, %v505
        %v510 = vld [vmem:[#allocation2 + $0x4] sm:$0x8]
        %v511 = vld [vmem:[#allocation2 + $0xc] sm:$0x7]
        %s512 = scalar_lea.vmem [#allocation7], 64
        %v513 = vld [vmem:[%s512] sm:$0xf]
        %v514 = vld [vmem:[%s512 + $0x4] sm:$0xf]
        %v515 = vld [vmem:[%s512 + $0x8] sm:$0xf]
        %v516 = vld [vmem:[%s512 + $0xc] sm:$0xf]
        %v517 = vld [vmem:[%s512 + $0x10] sm:$0xf]
        %v518 = vld [vmem:[%s512 + $0x14] sm:$0xf]
        %v519 = vld [vmem:[%s512 + $0x18] sm:$0xf]
        %v520 = vld [vmem:[%s512 + $0x1c] sm:$0xf]
        %v521 = vld [vmem:[%s512 + $0x20] sm:$0xf]
        %v522 = vld [vmem:[%s512 + $0x24] sm:$0xf]
        %v523 = vld [vmem:[%s512 + $0x28] sm:$0xf]
        %v524 = vld [vmem:[%s512 + $0x2c] sm:$0xf]
        %v525 = vld [vmem:[%s512 + $0x30] sm:$0xf]
        %v526 = vld [vmem:[%s512 + $0x34] sm:$0xf]
        %v527 = vld [vmem:[%s512 + $0x38] sm:$0xf]
        %v528 = vld [vmem:[%s512 + $0x3c] sm:$0xf]
        %v531 = vunpack.c.l.b16 %v510
        %v532 = vunpack.c.l.b16 %v511
        %v533 = vpack.c.b16 %v410, %v531
        %v534 = vpack.c.b16 %v532, %v532
        %vm535 = vcmask 1044480
        %v536 = vrot.slane %v533, 3
        %v537 = vrot.slane %v534, 3
        %v538 = vsel %vm535, %v536, %v537
        %v556 = vunpack.c.l.b16 %v513
        %v557 = vunpack.c.l.b16 %v514
        %v558 = vunpack.c.l.b16 %v515
        %v559 = vunpack.c.l.b16 %v516
        %v560 = vunpack.c.l.b16 %v517
        %v561 = vunpack.c.l.b16 %v518
        %v562 = vunpack.c.l.b16 %v519
        %v563 = vunpack.c.l.b16 %v520
        %v564 = vunpack.c.l.b16 %v521
        %v565 = vunpack.c.l.b16 %v522
        %v566 = vunpack.c.l.b16 %v523
        %v567 = vunpack.c.l.b16 %v524
        %v568 = vunpack.c.l.b16 %v525
        %v569 = vunpack.c.l.b16 %v526
        %v570 = vunpack.c.l.b16 %v527
        %v571 = vunpack.c.l.b16 %v528
        %v572 = vpack.c.b16 %v557, %v556
        %v573 = vpack.c.b16 %v559, %v558
        %v574 = vpack.c.b16 %v561, %v560
        %v575 = vpack.c.b16 %v563, %v562
        %v576 = vpack.c.b16 %v565, %v564
        %v577 = vpack.c.b16 %v567, %v566
        %v578 = vpack.c.b16 %v569, %v568
        %v579 = vpack.c.b16 %v571, %v570
        %588 = vmatprep.subr.bf16.mxu0 0
        %589 = vmatpush1.bf16.msra.mxu0 %v579
        %590 = vmatprep.subr.bf16.mxu0 0
        %591 = vmatpush1.bf16.msra.mxu0 %v578
        %592 = vmatprep.subr.bf16.mxu0 0
        %593 = vmatpush1.bf16.msra.mxu0 %v577
        %594 = vmatprep.subr.bf16.mxu0 0
        %595 = vmatpush1.bf16.msra.mxu0 %v576
        %596 = vmatprep.subr.bf16.mxu0 0
        %597 = vmatpush1.bf16.msra.mxu0 %v575
        %598 = vmatprep.subr.bf16.mxu0 0
        %599 = vmatpush1.bf16.msra.mxu0 %v574
        %600 = vmatprep.subr.bf16.mxu0 0
        %601 = vmatpush1.bf16.msra.mxu0 %v573
        %602 = vmatprep.subr.bf16.mxu0 0
        %603 = vmatpush1.bf16.msra.mxu0 %v572
        %604 = vmatprep.subr.bf16.mxu0 0
        %605 = vmatpush2.bf16.msra.mxu0 0
        %606 = vmatprep.subr.bf16.mxu0 0
        %607 = vmatpush2.bf16.msra.mxu0 0
        %608 = vmatprep.subr.bf16.mxu0 0
        %609 = vmatpush2.bf16.msra.mxu0 0
        %610 = vmatprep.subr.bf16.mxu0 0
        %611 = vmatpush2.bf16.msra.mxu0 0
        %612 = vmatprep.subr.bf16.mxu0 0
        %613 = vmatpush2.bf16.msra.mxu0 0
        %614 = vmatprep.subr.bf16.mxu0 0
        %615 = vmatpush2.bf16.msra.mxu0 0
        %616 = vmatprep.subr.bf16.mxu0 0
        %617 = vmatpush2.bf16.msra.mxu0 0
        %618 = vmatprep.subr.bf16.mxu0 0
        %619 = vmatpush2.bf16.msra.mxu0 0
        %620 = vmatprep.mubr.bf16.mxu0 0
        %621 = vmatmul.mubr.bf16.gmra.mxu0 %v538
        %v622 = vpop.f32.mrf.mxu0
        %v623 = vadd.f32 0.0, %v622
        %v624 = vpop.f32.mrf.mxu0
        %v625 = vpop.f32.mrf.mxu0
        %v626 = vadd.f32 0.0, %v625
        %v627 = vpop.f32.mrf.mxu0
        %628 = vdwg.mxu0
        %v629 = vadd.f32 %v508, %v623
        %v630 = vadd.f32 %v509, %v626
        %v631 = vld [vmem:[#allocation2 + $0xc] sm:$0xf]
        %s632 = scalar_lea.vmem [#allocation7], 128
        %v633 = vld [vmem:[%s632] sm:$0xf]
        %v634 = vld [vmem:[%s632 + $0x4] sm:$0xf]
        %v635 = vld [vmem:[%s632 + $0x8] sm:$0xf]
        %v636 = vld [vmem:[%s632 + $0xc] sm:$0xf]
        %v637 = vld [vmem:[%s632 + $0x10] sm:$0xf]
        %v638 = vld [vmem:[%s632 + $0x14] sm:$0xf]
        %v639 = vld [vmem:[%s632 + $0x18] sm:$0xf]
        %v640 = vld [vmem:[%s632 + $0x1c] sm:$0xf]
        %v641 = vld [vmem:[%s632 + $0x20] sm:$0xf]
        %v642 = vld [vmem:[%s632 + $0x24] sm:$0xf]
        %v643 = vld [vmem:[%s632 + $0x28] sm:$0xf]
        %v644 = vld [vmem:[%s632 + $0x2c] sm:$0xf]
        %v645 = vld [vmem:[%s632 + $0x30] sm:$0xf]
        %v646 = vld [vmem:[%s632 + $0x34] sm:$0xf]
        %v647 = vld [vmem:[%s632 + $0x38] sm:$0xf]
        %v648 = vld [vmem:[%s632 + $0x3c] sm:$0xf]
        %v650 = vunpack.c.l.b16 %v631
        %v651 = vpack.c.b16 %v650, %v410
        %v669 = vunpack.c.l.b16 %v633
        %v670 = vunpack.c.l.b16 %v634
        %v671 = vunpack.c.l.b16 %v635
        %v672 = vunpack.c.l.b16 %v636
        %v673 = vunpack.c.l.b16 %v637
        %v674 = vunpack.c.l.b16 %v638
        %v675 = vunpack.c.l.b16 %v639
        %v676 = vunpack.c.l.b16 %v640
        %v677 = vunpack.c.l.b16 %v641
        %v678 = vunpack.c.l.b16 %v642
        %v679 = vunpack.c.l.b16 %v643
        %v680 = vunpack.c.l.b16 %v644
        %v681 = vunpack.c.l.b16 %v645
        %v682 = vunpack.c.l.b16 %v646
        %v683 = vunpack.c.l.b16 %v647
        %v684 = vunpack.c.l.b16 %v648
        %v685 = vpack.c.b16 %v670, %v669
        %v686 = vpack.c.b16 %v672, %v671
        %v687 = vpack.c.b16 %v674, %v673
        %v688 = vpack.c.b16 %v676, %v675
        %v689 = vpack.c.b16 %v678, %v677
        %v690 = vpack.c.b16 %v680, %v679
        %v691 = vpack.c.b16 %v682, %v681
        %v692 = vpack.c.b16 %v684, %v683
        %701 = vmatprep.subr.bf16.mxu0 0
        %702 = vmatpush1.bf16.msra.mxu0 %v692
        %703 = vmatprep.subr.bf16.mxu0 0
        %704 = vmatpush1.bf16.msra.mxu0 %v691
        %705 = vmatprep.subr.bf16.mxu0 0
        %706 = vmatpush1.bf16.msra.mxu0 %v690
        %707 = vmatprep.subr.bf16.mxu0 0
        %708 = vmatpush1.bf16.msra.mxu0 %v689
        %709 = vmatprep.subr.bf16.mxu0 0
        %710 = vmatpush1.bf16.msra.mxu0 %v688
        %711 = vmatprep.subr.bf16.mxu0 0
        %712 = vmatpush1.bf16.msra.mxu0 %v687
        %713 = vmatprep.subr.bf16.mxu0 0
        %714 = vmatpush1.bf16.msra.mxu0 %v686
        %715 = vmatprep.subr.bf16.mxu0 0
        %716 = vmatpush1.bf16.msra.mxu0 %v685
        %717 = vmatprep.subr.bf16.mxu0 0
        %718 = vmatpush2.bf16.msra.mxu0 0
        %719 = vmatprep.subr.bf16.mxu0 0
        %720 = vmatpush2.bf16.msra.mxu0 0
        %721 = vmatprep.subr.bf16.mxu0 0
        %722 = vmatpush2.bf16.msra.mxu0 0
        %723 = vmatprep.subr.bf16.mxu0 0
        %724 = vmatpush2.bf16.msra.mxu0 0
        %725 = vmatprep.subr.bf16.mxu0 0
        %726 = vmatpush2.bf16.msra.mxu0 0
        %727 = vmatprep.subr.bf16.mxu0 0
        %728 = vmatpush2.bf16.msra.mxu0 0
        %729 = vmatprep.subr.bf16.mxu0 0
        %730 = vmatpush2.bf16.msra.mxu0 0
        %731 = vmatprep.subr.bf16.mxu0 0
        %732 = vmatpush2.bf16.msra.mxu0 0
        %733 = vmatprep.mubr.bf16.mxu0 0
        %734 = vmatmul.mubr.bf16.gmra.mxu0 %v651
        %v735 = vpop.f32.mrf.mxu0
        %v736 = vadd.f32 0.0, %v735
        %v737 = vpop.f32.mrf.mxu0
        %v738 = vpop.f32.mrf.mxu0
        %v739 = vadd.f32 0.0, %v738
        %v740 = vpop.f32.mrf.mxu0
        %741 = vdwg.mxu0
        %v742 = vadd.f32 %v629, %v736
        %v743 = vadd.f32 %v630, %v739
        %v744 = vmax.f32 %v742, 0.0
        %v745 = vmax.f32 %v743, 0.0
        %v746 = vpack.c.bf16 %v745, %v744
        %v748 = vunpack.c.l.b16 %v746
        %v749 = vunpack.c.h.b16 %v746
        %v750 = vpack.c.b16 %v748, %v748
        %v751 = vpack.c.b16 %v749, %v749
        %754 = vst [vmem:[#allocation3 + $0x8] sm:$0xf] %v750
        %755 = vst [vmem:[#allocation3 + $0xc] sm:$0xf] %v751
        %v756 = vld [vmem:[%s4] sm:$0x1]
        %v758 = vlaneseq
        %v759 = vshrl.u32 %v758, 7
        %v760 = vsub.s32 0, %v759
        %v761 = vrot.slane %v756, %v760
        %v763 = vld [vmem:[#allocation3 + $0x4] sm:$0xc]
        %v764 = vld [vmem:[#allocation3 + $0x8] sm:$0xf]
        %v765 = vld [vmem:[#allocation3 + $0xc] sm:$0x3]
        %v766 = vld [vmem:[#allocation9] sm:$0xf]
        %v767 = vld [vmem:[#allocation9 + $0x4] sm:$0xf]
        %v768 = vld [vmem:[#allocation9 + $0x8] sm:$0xf]
        %v769 = vld [vmem:[#allocation9 + $0xc] sm:$0xf]
        %v770 = vld [vmem:[#allocation9 + $0x10] sm:$0xf]
        %v771 = vld [vmem:[#allocation9 + $0x14] sm:$0xf]
        %v772 = vld [vmem:[#allocation9 + $0x18] sm:$0xf]
        %v773 = vld [vmem:[#allocation9 + $0x1c] sm:$0xf]
        %v774 = vld [vmem:[#allocation9 + $0x20] sm:$0xf]
        %v775 = vld [vmem:[#allocation9 + $0x24] sm:$0xf]
        %v776 = vld [vmem:[#allocation9 + $0x28] sm:$0xf]
        %v777 = vld [vmem:[#allocation9 + $0x2c] sm:$0xf]
        %v778 = vld [vmem:[#allocation9 + $0x30] sm:$0xf]
        %v779 = vld [vmem:[#allocation9 + $0x34] sm:$0xf]
        %v780 = vld [vmem:[#allocation9 + $0x38] sm:$0xf]
        %v781 = vld [vmem:[#allocation9 + $0x3c] sm:$0xf]
        %v785 = vunpack.c.l.b16 %v763
        %v786 = vunpack.c.l.b16 %v764
        %v787 = vunpack.c.l.b16 %v765
        %v788 = vpack.c.b16 %v786, %v785
        %v789 = vpack.c.b16 %v787, %v787
        %v790 = vrot.slane %v788, 2
        %v791 = vrot.slane %v789, 2
        %v792 = vsel %vm414, %v790, %v791
        %v810 = vunpack.c.l.b16 %v766
        %v811 = vunpack.c.l.b16 %v767
        %v812 = vunpack.c.l.b16 %v768
        %v813 = vunpack.c.l.b16 %v769
        %v814 = vunpack.c.l.b16 %v770
        %v815 = vunpack.c.l.b16 %v771
        %v816 = vunpack.c.l.b16 %v772
        %v817 = vunpack.c.l.b16 %v773
        %v818 = vunpack.c.l.b16 %v774
        %v819 = vunpack.c.l.b16 %v775
        %v820 = vunpack.c.l.b16 %v776
        %v821 = vunpack.c.l.b16 %v777
        %v822 = vunpack.c.l.b16 %v778
        %v823 = vunpack.c.l.b16 %v779
        %v824 = vunpack.c.l.b16 %v780
        %v825 = vunpack.c.l.b16 %v781
        %v826 = vpack.c.b16 %v811, %v810
        %v827 = vpack.c.b16 %v813, %v812
        %v828 = vpack.c.b16 %v815, %v814
        %v829 = vpack.c.b16 %v817, %v816
        %v830 = vpack.c.b16 %v819, %v818
        %v831 = vpack.c.b16 %v821, %v820
        %v832 = vpack.c.b16 %v823, %v822
        %v833 = vpack.c.b16 %v825, %v824
        %842 = vmatprep.subr.bf16.mxu0 0
        %843 = vmatpush1.bf16.msra.mxu0 %v833
        %844 = vmatprep.subr.bf16.mxu0 0
        %845 = vmatpush1.bf16.msra.mxu0 %v832
        %846 = vmatprep.subr.bf16.mxu0 0
        %847 = vmatpush1.bf16.msra.mxu0 %v831
        %848 = vmatprep.subr.bf16.mxu0 0
        %849 = vmatpush1.bf16.msra.mxu0 %v830
        %850 = vmatprep.subr.bf16.mxu0 0
        %851 = vmatpush1.bf16.msra.mxu0 %v829
        %852 = vmatprep.subr.bf16.mxu0 0
        %853 = vmatpush1.bf16.msra.mxu0 %v828
        %854 = vmatprep.subr.bf16.mxu0 0
        %855 = vmatpush1.bf16.msra.mxu0 %v827
        %856 = vmatprep.subr.bf16.mxu0 0
        %857 = vmatpush1.bf16.msra.mxu0 %v826
        %858 = vmatprep.subr.bf16.mxu0 0
        %859 = vmatpush2.bf16.msra.mxu0 0
        %860 = vmatprep.subr.bf16.mxu0 0
        %861 = vmatpush2.bf16.msra.mxu0 0
        %862 = vmatprep.subr.bf16.mxu0 0
        %863 = vmatpush2.bf16.msra.mxu0 0
        %864 = vmatprep.subr.bf16.mxu0 0
        %865 = vmatpush2.bf16.msra.mxu0 0
        %866 = vmatprep.subr.bf16.mxu0 0
        %867 = vmatpush2.bf16.msra.mxu0 0
        %868 = vmatprep.subr.bf16.mxu0 0
        %869 = vmatpush2.bf16.msra.mxu0 0
        %870 = vmatprep.subr.bf16.mxu0 0
        %871 = vmatpush2.bf16.msra.mxu0 0
        %872 = vmatprep.subr.bf16.mxu0 0
        %873 = vmatpush2.bf16.msra.mxu0 0
        %874 = vmatprep.mubr.bf16.mxu0 0
        %875 = vmatmul.mubr.bf16.gmra.mxu0 %v792
        %v876 = vpop.f32.mrf.mxu0
        %v877 = vadd.f32 0.0, %v876
        %v878 = vpop.f32.mrf.mxu0
        %v879 = vpop.f32.mrf.mxu0
        %v880 = vadd.f32 0.0, %v879
        %v881 = vpop.f32.mrf.mxu0
        %882 = vdwg.mxu0
        %v883 = vadd.f32 %v761, %v877
        %v884 = vadd.f32 %v761, %v880
        %v885 = vld [vmem:[#allocation3 + $0x4] sm:$0x8]
        %v886 = vld [vmem:[#allocation3 + $0xc] sm:$0x7]
        %s887 = scalar_lea.vmem [#allocation9], 64
        %v888 = vld [vmem:[%s887] sm:$0xf]
        %v889 = vld [vmem:[%s887 + $0x4] sm:$0xf]
        %v890 = vld [vmem:[%s887 + $0x8] sm:$0xf]
        %v891 = vld [vmem:[%s887 + $0xc] sm:$0xf]
        %v892 = vld [vmem:[%s887 + $0x10] sm:$0xf]
        %v893 = vld [vmem:[%s887 + $0x14] sm:$0xf]
        %v894 = vld [vmem:[%s887 + $0x18] sm:$0xf]
        %v895 = vld [vmem:[%s887 + $0x1c] sm:$0xf]
        %v896 = vld [vmem:[%s887 + $0x20] sm:$0xf]
        %v897 = vld [vmem:[%s887 + $0x24] sm:$0xf]
        %v898 = vld [vmem:[%s887 + $0x28] sm:$0xf]
        %v899 = vld [vmem:[%s887 + $0x2c] sm:$0xf]
        %v900 = vld [vmem:[%s887 + $0x30] sm:$0xf]
        %v901 = vld [vmem:[%s887 + $0x34] sm:$0xf]
        %v902 = vld [vmem:[%s887 + $0x38] sm:$0xf]
        %v903 = vld [vmem:[%s887 + $0x3c] sm:$0xf]
        %v906 = vunpack.c.l.b16 %v885
        %v907 = vunpack.c.l.b16 %v886
        %v908 = vpack.c.b16 %v786, %v906
        %v909 = vpack.c.b16 %v907, %v907
        %v910 = vrot.slane %v908, 3
        %v911 = vrot.slane %v909, 3
        %v912 = vsel %vm535, %v910, %v911
        %v930 = vunpack.c.l.b16 %v888
        %v931 = vunpack.c.l.b16 %v889
        %v932 = vunpack.c.l.b16 %v890
        %v933 = vunpack.c.l.b16 %v891
        %v934 = vunpack.c.l.b16 %v892
        %v935 = vunpack.c.l.b16 %v893
        %v936 = vunpack.c.l.b16 %v894
        %v937 = vunpack.c.l.b16 %v895
        %v938 = vunpack.c.l.b16 %v896
        %v939 = vunpack.c.l.b16 %v897
        %v940 = vunpack.c.l.b16 %v898
        %v941 = vunpack.c.l.b16 %v899
        %v942 = vunpack.c.l.b16 %v900
        %v943 = vunpack.c.l.b16 %v901
        %v944 = vunpack.c.l.b16 %v902
        %v945 = vunpack.c.l.b16 %v903
        %v946 = vpack.c.b16 %v931, %v930
        %v947 = vpack.c.b16 %v933, %v932
        %v948 = vpack.c.b16 %v935, %v934
        %v949 = vpack.c.b16 %v937, %v936
        %v950 = vpack.c.b16 %v939, %v938
        %v951 = vpack.c.b16 %v941, %v940
        %v952 = vpack.c.b16 %v943, %v942
        %v953 = vpack.c.b16 %v945, %v944
        %962 = vmatprep.subr.bf16.mxu0 0
        %963 = vmatpush1.bf16.msra.mxu0 %v953
        %964 = vmatprep.subr.bf16.mxu0 0
        %965 = vmatpush1.bf16.msra.mxu0 %v952
        %966 = vmatprep.subr.bf16.mxu0 0
        %967 = vmatpush1.bf16.msra.mxu0 %v951
        %968 = vmatprep.subr.bf16.mxu0 0
        %969 = vmatpush1.bf16.msra.mxu0 %v950
        %970 = vmatprep.subr.bf16.mxu0 0
        %971 = vmatpush1.bf16.msra.mxu0 %v949
        %972 = vmatprep.subr.bf16.mxu0 0
        %973 = vmatpush1.bf16.msra.mxu0 %v948
        %974 = vmatprep.subr.bf16.mxu0 0
        %975 = vmatpush1.bf16.msra.mxu0 %v947
        %976 = vmatprep.subr.bf16.mxu0 0
        %977 = vmatpush1.bf16.msra.mxu0 %v946
        %978 = vmatprep.subr.bf16.mxu0 0
        %979 = vmatpush2.bf16.msra.mxu0 0
        %980 = vmatprep.subr.bf16.mxu0 0
        %981 = vmatpush2.bf16.msra.mxu0 0
        %982 = vmatprep.subr.bf16.mxu0 0
        %983 = vmatpush2.bf16.msra.mxu0 0
        %984 = vmatprep.subr.bf16.mxu0 0
        %985 = vmatpush2.bf16.msra.mxu0 0
        %986 = vmatprep.subr.bf16.mxu0 0
        %987 = vmatpush2.bf16.msra.mxu0 0
        %988 = vmatprep.subr.bf16.mxu0 0
        %989 = vmatpush2.bf16.msra.mxu0 0
        %990 = vmatprep.subr.bf16.mxu0 0
        %991 = vmatpush2.bf16.msra.mxu0 0
        %992 = vmatprep.subr.bf16.mxu0 0
        %993 = vmatpush2.bf16.msra.mxu0 0
        %994 = vmatprep.mubr.bf16.mxu0 0
        %995 = vmatmul.mubr.bf16.gmra.mxu0 %v912
        %v996 = vpop.f32.mrf.mxu0
        %v997 = vadd.f32 0.0, %v996
        %v998 = vpop.f32.mrf.mxu0
        %v999 = vpop.f32.mrf.mxu0
        %v1000 = vadd.f32 0.0, %v999
        %v1001 = vpop.f32.mrf.mxu0
        %1002 = vdwg.mxu0
        %v1003 = vadd.f32 %v883, %v997
        %v1004 = vadd.f32 %v884, %v1000
        %v1005 = vld [vmem:[#allocation3 + $0xc] sm:$0xf]
        %s1006 = scalar_lea.vmem [#allocation9], 128
        %v1007 = vld [vmem:[%s1006] sm:$0xf]
        %v1008 = vld [vmem:[%s1006 + $0x4] sm:$0xf]
        %v1009 = vld [vmem:[%s1006 + $0x8] sm:$0xf]
        %v1010 = vld [vmem:[%s1006 + $0xc] sm:$0xf]
        %v1011 = vld [vmem:[%s1006 + $0x10] sm:$0xf]
        %v1012 = vld [vmem:[%s1006 + $0x14] sm:$0xf]
        %v1013 = vld [vmem:[%s1006 + $0x18] sm:$0xf]
        %v1014 = vld [vmem:[%s1006 + $0x1c] sm:$0xf]
        %v1015 = vld [vmem:[%s1006 + $0x20] sm:$0xf]
        %v1016 = vld [vmem:[%s1006 + $0x24] sm:$0xf]
        %v1017 = vld [vmem:[%s1006 + $0x28] sm:$0xf]
        %v1018 = vld [vmem:[%s1006 + $0x2c] sm:$0xf]
        %v1019 = vld [vmem:[%s1006 + $0x30] sm:$0xf]
        %v1020 = vld [vmem:[%s1006 + $0x34] sm:$0xf]
        %v1021 = vld [vmem:[%s1006 + $0x38] sm:$0xf]
        %v1022 = vld [vmem:[%s1006 + $0x3c] sm:$0xf]
        %v1024 = vunpack.c.l.b16 %v1005
        %v1025 = vpack.c.b16 %v1024, %v786
        %v1043 = vunpack.c.l.b16 %v1007
        %v1044 = vunpack.c.l.b16 %v1008
        %v1045 = vunpack.c.l.b16 %v1009
        %v1046 = vunpack.c.l.b16 %v1010
        %v1047 = vunpack.c.l.b16 %v1011
        %v1048 = vunpack.c.l.b16 %v1012
        %v1049 = vunpack.c.l.b16 %v1013
        %v1050 = vunpack.c.l.b16 %v1014
        %v1051 = vunpack.c.l.b16 %v1015
        %v1052 = vunpack.c.l.b16 %v1016
        %v1053 = vunpack.c.l.b16 %v1017
        %v1054 = vunpack.c.l.b16 %v1018
        %v1055 = vunpack.c.l.b16 %v1019
        %v1056 = vunpack.c.l.b16 %v1020
        %v1057 = vunpack.c.l.b16 %v1021
        %v1058 = vunpack.c.l.b16 %v1022
        %v1059 = vpack.c.b16 %v1044, %v1043
        %v1060 = vpack.c.b16 %v1046, %v1045
        %v1061 = vpack.c.b16 %v1048, %v1047
        %v1062 = vpack.c.b16 %v1050, %v1049
        %v1063 = vpack.c.b16 %v1052, %v1051
        %v1064 = vpack.c.b16 %v1054, %v1053
        %v1065 = vpack.c.b16 %v1056, %v1055
        %v1066 = vpack.c.b16 %v1058, %v1057
        %1075 = vmatprep.subr.bf16.mxu0 0
        %1076 = vmatpush1.bf16.msra.mxu0 %v1066
        %1077 = vmatprep.subr.bf16.mxu0 0
        %1078 = vmatpush1.bf16.msra.mxu0 %v1065
        %1079 = vmatprep.subr.bf16.mxu0 0
        %1080 = vmatpush1.bf16.msra.mxu0 %v1064
        %1081 = vmatprep.subr.bf16.mxu0 0
        %1082 = vmatpush1.bf16.msra.mxu0 %v1063
        %1083 = vmatprep.subr.bf16.mxu0 0
        %1084 = vmatpush1.bf16.msra.mxu0 %v1062
        %1085 = vmatprep.subr.bf16.mxu0 0
        %1086 = vmatpush1.bf16.msra.mxu0 %v1061
        %1087 = vmatprep.subr.bf16.mxu0 0
        %1088 = vmatpush1.bf16.msra.mxu0 %v1060
        %1089 = vmatprep.subr.bf16.mxu0 0
        %1090 = vmatpush1.bf16.msra.mxu0 %v1059
        %1091 = vmatprep.subr.bf16.mxu0 0
        %1092 = vmatpush2.bf16.msra.mxu0 0
        %1093 = vmatprep.subr.bf16.mxu0 0
        %1094 = vmatpush2.bf16.msra.mxu0 0
        %1095 = vmatprep.subr.bf16.mxu0 0
        %1096 = vmatpush2.bf16.msra.mxu0 0
        %1097 = vmatprep.subr.bf16.mxu0 0
        %1098 = vmatpush2.bf16.msra.mxu0 0
        %1099 = vmatprep.subr.bf16.mxu0 0
        %1100 = vmatpush2.bf16.msra.mxu0 0
        %1101 = vmatprep.subr.bf16.mxu0 0
        %1102 = vmatpush2.bf16.msra.mxu0 0
        %1103 = vmatprep.subr.bf16.mxu0 0
        %1104 = vmatpush2.bf16.msra.mxu0 0
        %1105 = vmatprep.subr.bf16.mxu0 0
        %1106 = vmatpush2.bf16.msra.mxu0 0
        %1107 = vmatprep.mubr.bf16.mxu0 0
        %1108 = vmatmul.mubr.bf16.gmra.mxu0 %v1025
        %v1109 = vpop.f32.mrf.mxu0
        %v1110 = vadd.f32 0.0, %v1109
        %v1111 = vpop.f32.mrf.mxu0
        %v1112 = vpop.f32.mrf.mxu0
        %v1113 = vadd.f32 0.0, %v1112
        %v1114 = vpop.f32.mrf.mxu0
        %1115 = vdwg.mxu0
        %v1116 = vadd.f32 %v1003, %v1110
        %v1117 = vadd.f32 %v1004, %v1113
        %v1118 = vmax.f32 %v1116, 0.0
        %v1119 = vmax.f32 %v1117, 0.0
        %v1120 = vld [vmem:[#allocation2 + $0x8] sm:$0xf]
        %v1121 = vld [vmem:[#allocation2 + $0xc] sm:$0xf]
        %v1122 = vld [vmem:[#allocation10] sm:$0xf]
        %v1123 = vld [vmem:[#allocation10 + $0x4] sm:$0xf]
        %v1124 = vld [vmem:[#allocation10 + $0x8] sm:$0xf]
        %v1125 = vld [vmem:[#allocation10 + $0xc] sm:$0xf]
        %v1126 = vld [vmem:[#allocation10 + $0x10] sm:$0xf]
        %v1127 = vld [vmem:[#allocation10 + $0x14] sm:$0xf]
        %v1128 = vld [vmem:[#allocation10 + $0x18] sm:$0xf]
        %v1129 = vld [vmem:[#allocation10 + $0x1c] sm:$0xf]
        %v1130 = vld [vmem:[#allocation10 + $0x20] sm:$0xf]
        %v1131 = vld [vmem:[#allocation10 + $0x24] sm:$0xf]
        %v1132 = vld [vmem:[#allocation10 + $0x28] sm:$0xf]
        %v1133 = vld [vmem:[#allocation10 + $0x2c] sm:$0xf]
        %v1134 = vld [vmem:[#allocation10 + $0x30] sm:$0xf]
        %v1135 = vld [vmem:[#allocation10 + $0x34] sm:$0xf]
        %v1136 = vld [vmem:[#allocation10 + $0x38] sm:$0xf]
        %v1137 = vld [vmem:[#allocation10 + $0x3c] sm:$0xf]
        %v1138 = vld [vmem:[%s6] sm:$0x1]
        %v1140 = vlaneseq
        %v1141 = vshrl.u32 %v1140, 7
        %v1142 = vsub.s32 0, %v1141
        %v1143 = vrot.slane %v1138, %v1142
        %v1147 = vunpack.c.l.b16 %v1120
        %v1148 = vunpack.c.l.b16 %v1121
        %v1149 = vpack.c.b16 %v1148, %v1147
        %v1167 = vunpack.c.l.b16 %v1122
        %v1168 = vunpack.c.l.b16 %v1123
        %v1169 = vunpack.c.l.b16 %v1124
        %v1170 = vunpack.c.l.b16 %v1125
        %v1171 = vunpack.c.l.b16 %v1126
        %v1172 = vunpack.c.l.b16 %v1127
        %v1173 = vunpack.c.l.b16 %v1128
        %v1174 = vunpack.c.l.b16 %v1129
        %v1175 = vunpack.c.l.b16 %v1130
        %v1176 = vunpack.c.l.b16 %v1131
        %v1177 = vunpack.c.l.b16 %v1132
        %v1178 = vunpack.c.l.b16 %v1133
        %v1179 = vunpack.c.l.b16 %v1134
        %v1180 = vunpack.c.l.b16 %v1135
        %v1181 = vunpack.c.l.b16 %v1136
        %v1182 = vunpack.c.l.b16 %v1137
        %v1183 = vpack.c.b16 %v1168, %v1167
        %v1184 = vpack.c.b16 %v1170, %v1169
        %v1185 = vpack.c.b16 %v1172, %v1171
        %v1186 = vpack.c.b16 %v1174, %v1173
        %v1187 = vpack.c.b16 %v1176, %v1175
        %v1188 = vpack.c.b16 %v1178, %v1177
        %v1189 = vpack.c.b16 %v1180, %v1179
        %v1190 = vpack.c.b16 %v1182, %v1181
        %1199 = vmatprep.subr.bf16.mxu0 0
        %1200 = vmatpush1.bf16.msra.mxu0 %v1190
        %1201 = vmatprep.subr.bf16.mxu0 0
        %1202 = vmatpush1.bf16.msra.mxu0 %v1189
        %1203 = vmatprep.subr.bf16.mxu0 0
        %1204 = vmatpush1.bf16.msra.mxu0 %v1188
        %1205 = vmatprep.subr.bf16.mxu0 0
        %1206 = vmatpush1.bf16.msra.mxu0 %v1187
        %1207 = vmatprep.subr.bf16.mxu0 0
        %1208 = vmatpush1.bf16.msra.mxu0 %v1186
        %1209 = vmatprep.subr.bf16.mxu0 0
        %1210 = vmatpush1.bf16.msra.mxu0 %v1185
        %1211 = vmatprep.subr.bf16.mxu0 0
        %1212 = vmatpush1.bf16.msra.mxu0 %v1184
        %1213 = vmatprep.subr.bf16.mxu0 0
        %1214 = vmatpush1.bf16.msra.mxu0 %v1183
        %1215 = vmatprep.subr.bf16.mxu0 0
        %1216 = vmatpush2.bf16.msra.mxu0 0
        %1217 = vmatprep.subr.bf16.mxu0 0
        %1218 = vmatpush2.bf16.msra.mxu0 0
        %1219 = vmatprep.subr.bf16.mxu0 0
        %1220 = vmatpush2.bf16.msra.mxu0 0
        %1221 = vmatprep.subr.bf16.mxu0 0
        %1222 = vmatpush2.bf16.msra.mxu0 0
        %1223 = vmatprep.subr.bf16.mxu0 0
        %1224 = vmatpush2.bf16.msra.mxu0 0
        %1225 = vmatprep.subr.bf16.mxu0 0
        %1226 = vmatpush2.bf16.msra.mxu0 0
        %1227 = vmatprep.subr.bf16.mxu0 0
        %1228 = vmatpush2.bf16.msra.mxu0 0
        %1229 = vmatprep.subr.bf16.mxu0 0
        %1230 = vmatpush2.bf16.msra.mxu0 0
        %1231 = vmatprep.mubr.bf16.mxu0 0
        %1232 = vmatmul.mubr.bf16.gmra.mxu0 %v1149
        %v1233 = vpop.f32.mrf.mxu0
        %v1234 = vadd.f32 %v1143, %v1233
        %v1235 = vpop.f32.mrf.mxu0
        %v1236 = vpop.f32.mrf.mxu0
        %v1237 = vadd.f32 %v1143, %v1236
        %v1238 = vpop.f32.mrf.mxu0
        %1239 = vdwg.mxu0
        %v1240 = vadd.f32 %v1118, %v1234
        %v1241 = vadd.f32 %v1119, %v1237
        %v1242 = vmax.f32 %v1240, 0.0
        %v1243 = vmax.f32 %v1241, 0.0
        %v1244 = vpack.c.bf16 %v1243, %v1242
        %v1246 = vunpack.c.l.b16 %v1244
        %v1247 = vunpack.c.h.b16 %v1244
        %v1248 = vpack.c.b16 %v1246, %v1246
        %v1249 = vpack.c.b16 %v1247, %v1247
        %1252 = vst [vmem:[%s358] sm:$0xf] %v1248
        %1253 = vst [vmem:[%s358 + $0x4] sm:$0xf] %v1249
        %s1254 = sand.u32 %s202, 1
        %s1255 = scalar_lea.sflag [#allocation6], %s1254
        %s1256 = sand.u32 %s202, 1
        %s1257 = smul.addr %s1256, 8
        %s1258 = scalar_lea.vmem [#allocation12], %s1257
        // Predicated region
        $region73: #{tpu_custom_call.1} parent=47 // pred_check
          %p1259 = pneg %p212
        $region74: #{tpu_custom_call.1} parent=47 // pred_check_branch
          %1261 = sbr.rel (%p1259) target = $region76
        $region75: #{tpu_custom_call.1} parent=47 // pred_region
          %s1262 = smul.u32 2, %s31
          %s1264 = ssub.s32 128, 128
          %1265 = vsyncadd %s1255, %s1264
          %s1266 = smul.addr %s30, 2
          %s1267 = sadd.s32 %s1262, %s1266
          %s1268 = smul.addr %s1267, 64
          %s1269 = scalar_lea.hbm %s7, %s1268
          %s1270 = sshll.u32 %s1258, 4
          %s1271 = int_to_ptr.vmem [resolvable:$true] %s1270
          %1276 = dma.vmem_to_hbm [thread:$0]  %s1271, 128, %s1269, %s1255, 64, 64, 4
        $region76: #{tpu_custom_call.1} parent=47 // pred_fallthru
          _
      $region48: #{tpu_custom_call.1} parent=5 // pred_fallthru
        _
      %p1277 = scmp.le.s32.totalorder 2, %s21
      // Predicated region
      $region77: #{tpu_custom_call.1} parent=5 // pred_check
        %p1278 = pneg %p1277
      $region78: #{tpu_custom_call.1} parent=5 // pred_check_branch
        %1280 = sbr.rel (%p1278) target = $region80
      $region79: #{tpu_custom_call.1} parent=5 // pred_region
        %s1281 = ssub.s32 %s21, 2
        // Predicated region
        $region81: #{tpu_custom_call.1} parent=79 // pred_check
          %p1282 = pneg %p218
        $region82: #{tpu_custom_call.1} parent=79 // pred_check_branch
          %1284 = sbr.rel (%p1282) target = $region84
        $region83: #{tpu_custom_call.1} parent=79 // pred_region
          %s1285 = sand.u32 %s203, 1
          %s1286 = scalar_lea.sflag [#allocation6], %s1285
          %s1287 = sand.u32 %s203, 1
          %s1288 = smul.addr %s1287, 8
          %s1289 = scalar_lea.vmem [#allocation12], %s1288
          %1290 = dma.done %s1286, 128
        $region84: #{tpu_custom_call.1} parent=79 // pred_fallthru
          _
      $region80: #{tpu_custom_call.1} parent=5 // pred_fallthru
        _
    $region6: #{tpu_custom_call.1} parent=1 // loop_footer
      %s25 = sadd.s32 1, %s21
    $region7: #{tpu_custom_call.1} parent=1 // loop_footer_branch
      %20 = sbr.rel target = $region3
    $region8: #{tpu_custom_call.1} parent=1 // loop_exit
      _
    %1291 = vsyncpa [#allocation5], 1
    %s1292 = scalar_lea.sflag [#allocation5], 1
    %1293 = vsyncpa %s1292, 1
    %1294 = vsyncpa [#allocation8], 1
    %1295 = vsyncpa [#allocation11], 1
    %1296 = vsyncpa [#allocation6], 1
    %s1297 = scalar_lea.sflag [#allocation6], 1
    %1298 = vsyncpa %s1297, 1

</llo_original>
